<compile_context>
chip_gen: v7x
topology: tpu7x:2x2x1
jax: 0.10.0
libtpu: 0.0.40
codegen_flags: <defaults>
</compile_context>

<pallas_src>
from functools import partial

import jax
import jax.numpy as jnp
from jax import lax
from jax.experimental import pallas as pl
from jax.experimental.pallas import tpu as pltpu


def _fused_dwconv_kernel(*refs, K, stride, dilation, pad, H, W, Wp, Hp_alloc, Ho, Wo,
                         TH, TC, has_expand, scratch_dtype):
    """Fused [1x1 conv + BN + ReLU] -> [depthwise KxK + BN + ReLU] for one (image, C-tile, strip).

    refs (has_expand=True):  x, w_pw, shift1, w_dw, shift2, out, ypad_scratch
    refs (has_expand=False): x, w_dw, shift2, out, ypad_scratch
      x      : (1, H, W, Cin) or (1, H, W, TC)
      w_pw   : (Cin, TC)   (BN scale pre-folded, compute dtype)
      w_dw   : (K, K, TC)  (BN scale pre-folded, f32)
      shift* : (1, TC)     f32
      out    : (1, TH, Wo, TC)
      ypad   : (Hp_alloc, Wp, TC) scratch holding the padded expanded activation
    """
    if has_expand:
        x_ref, wpw_ref, shift1_ref, wdw_ref, shift2_ref, o_ref, ypad_ref = refs
    else:
        x_ref, wdw_ref, shift2_ref, o_ref, ypad_ref = refs

    sdt = scratch_dtype
    h_id = pl.program_id(2)

    # ---- stage 1: runs once per (image, channel-tile), i.e. at the first row strip ----------
    # Megacore note: axis 2 is "arbitrary", so every (n, c) pair executes h == 0 first on
    # whichever TensorCore owns it; this guard is therefore per-(n, c), not per-grid, and safe.
    @pl.when(h_id == 0)
    def _stage1():
        if has_expand:
            # 1x1 conv on the MXU (bf16/f32 feed, f32 accumulation) + folded-BN shift + ReLU.
            cin = x_ref.shape[-1]
            x2d = x_ref[0].reshape(H * W, cin)
            y = jnp.dot(x2d, wpw_ref[...], preferred_element_type=jnp.float32)
            y = jnp.maximum(y + shift1_ref[...], 0.0)
            y = y.reshape(H, W, TC).astype(sdt)
        else:
            y = x_ref[0].astype(sdt)
        # Fuse the W-halo zeros into the interior row store: build full Wp-wide rows so the
        # store is a wide row store, not Hp masked per-column stores.
        if pad > 0:
            zcol = jnp.zeros((H, pad, TC), sdt)
            y = jnp.concatenate([zcol, y, zcol], axis=1)          # (H, Wp, TC)
        ypad_ref[pl.ds(pad, H), :, :] = y
        # Top halo and (possibly extended, for the partial last strip) bottom halo rows.
        if pad > 0:
            ypad_ref[pl.ds(0, pad), :, :] = jnp.zeros((pad, Wp, TC), sdt)
        bot = Hp_alloc - (pad + H)
        if bot > 0:
            ypad_ref[pl.ds(pad + H, bot), :, :] = jnp.zeros((bot, Wp, TC), sdt)

    # ---- stage 2: depthwise KxK + folded-BN shift + ReLU for one strip of TH output rows ----
    wdw = wdw_ref[...].astype(jnp.float32)                        # (K, K, TC)
    row_base = pl.multiple_of(h_id * (TH * stride), TH * stride)  # padded-row offset of strip
    # Initialise the accumulator with the folded-BN shift (removes a trailing add pass).
    acc = jnp.broadcast_to(shift2_ref[...].reshape(1, 1, TC),
                           (TH, Wo, TC)).astype(jnp.float32)
    for kh in range(K):
        for kw in range(K):
            r0 = row_base + kh * dilation
            if stride == 1:
                # Fast path: each tap is a contiguous ref window read of the padded scratch.
                tap = ypad_ref[pl.ds(r0, TH), pl.ds(kw * dilation, Wo), :]
            else:
                # stride > 1 (implies dilation == 1): strided window reads straight off the
                # scratch ref -- no full-scratch load, no per-tap strided-slice copies.
                tap = ypad_ref[pl.ds(r0, TH, stride), pl.ds(kw * dilation, Wo, stride), :]
            acc = acc + tap.astype(jnp.float32) * wdw[kh, kw, :]
    o_ref[0] = jnp.maximum(acc, 0.0).astype(o_ref.dtype)


def _vmem_budget_bytes():
    """Per-generation scoped-VMEM cap: physical capacity minus ~12% headroom for compiler
    internal scratch (v7x: 64 MiB -> ~56 MiB; v5e/v6e: 128 MiB -> ~112 MiB)."""
    try:
        info = pltpu.get_tpu_info()
        cap = int(getattr(info, "vmem_capacity_bytes", 0) or 0)
        if cap > 0:
            return cap - max(cap // 8, 8 * 2**20)
    except Exception:
        pass
    return 56 * 2**20   # safe on every generation if the query is unavailable


def _pick_channel_tile(cexp, requested=None):
    """Lane-tile width.  128 by default; 256 on v6e when Cexp >= 256 (fills the 2x256 MXU and
    halves grid steps / x re-reads).  Keep 128 on v7x (64 MiB VMEM) and v5e (128-wide MXU)."""
    if cexp <= 128:
        return cexp
    if requested is not None:
        tc = max(128, (int(requested) // 128) * 128)
    else:
        tc = 128
        try:
            info = pltpu.get_tpu_info()
            vmem = int(getattr(info, "vmem_capacity_bytes", 0) or 0)
            chip = str(getattr(info, "chip_version", "")).lower()
            if cexp >= 256 and vmem >= 128 * 2**20 and "v6" in chip:
                tc = 256
        except Exception:
            pass
    return min(tc, ((cexp + 127) // 128) * 128)


def depthwise_conv_block(x, params, *, input_channels, expanded_channels, kernel_size,
                         stride=1, dilation=1, data_format="NCHW",
                         compute_dtype=jnp.bfloat16, scratch_dtype=jnp.bfloat16,
                         row_tile=8, channel_tile=None):
    """Forward pass of the `depthwiseConv` module (BatchNorm in eval mode, ReLU activation).

    params:
      w_pw   : (Cin, Cexp)   1x1 conv weight  (only needed when Cexp != Cin)
      scale1, shift1 : (Cexp,)  folded BN of the 1x1 stage
      w_dw   : (K, K, Cexp)  depthwise conv weight
      scale2, shift2 : (Cexp,)  folded BN of the depthwise stage

    compute_dtype : dtype fed to the MXU for the 1x1 stage (default bf16, f32 accumulation).
    scratch_dtype : dtype of the padded expanded-activation VMEM scratch (default bf16;
                    pass jnp.float32 on v5e where bf16 VPU conversions are not free).
    """
    stride = 1 if dilation > 1 else int(stride)
    K = int(kernel_size)
    pad = K // 2

    if data_format == "NCHW":
        # Module-boundary layout change only; pass "NHWC" to eliminate both transposes.
        x_nhwc = jnp.transpose(x, (0, 2, 3, 1))
    elif data_format == "NHWC":
        x_nhwc = x
    else:
        raise ValueError(data_format)

    N, H, W, Cin = x_nhwc.shape
    assert Cin == input_channels, (Cin, input_channels)
    Cexp = int(expanded_channels)
    has_expand = Cexp != Cin
    out_dtype = x.dtype

    sdt = jnp.dtype(scratch_dtype) if scratch_dtype is not None else jnp.dtype(jnp.float32)
    cdt = jnp.dtype(compute_dtype) if compute_dtype is not None else jnp.dtype(x_nhwc.dtype)

    # Fold the BN scale into the conv weights (conv is linear); only the shift stays in-kernel.
    w_dw_s = (params["w_dw"] * params["scale2"].reshape(1, 1, -1)).astype(jnp.float32)
    shift2 = params["shift2"].reshape(1, -1).astype(jnp.float32)
    x_nhwc = x_nhwc.astype(cdt)
    if has_expand:
        w_pw_s = (params["w_pw"] * params["scale1"].reshape(1, -1)).astype(cdt)
        shift1 = params["shift1"].reshape(1, -1).astype(jnp.float32)

    Hp, Wp = H + 2 * pad, W + 2 * pad
    Ho = (Hp - dilation * (K - 1) - 1) // stride + 1
    Wo = (Wp - dilation * (K - 1) - 1) // stride + 1

    TC = _pick_channel_tile(Cexp, channel_tile)
    c_tiles = pl.cdiv(Cexp, TC)
    TH = max(1, min(int(row_tile), Ho))
    h_strips = pl.cdiv(Ho, TH)
    # Scratch rows cover the last (possibly partial) strip's halo so tap reads never go OOB;
    # the extra rows are zeroed once per (n, c) and their outputs are clipped by Pallas.
    Hp_alloc = max(Hp, (h_strips * TH - 1) * stride + dilation * (K - 1) + 1)

    kern = partial(_fused_dwconv_kernel, K=K, stride=stride, dilation=dilation, pad=pad,
                   H=H, W=W, Wp=Wp, Hp_alloc=Hp_alloc, Ho=Ho, Wo=Wo, TH=TH, TC=TC,
                   has_expand=has_expand, scratch_dtype=sdt)

    if has_expand:
        in_specs = [
            pl.BlockSpec((1, H, W, Cin), lambda n, c, h: (n, 0, 0, 0)),   # resident across c,h
            pl.BlockSpec((Cin, TC), lambda n, c, h: (0, c)),
            pl.BlockSpec((1, TC), lambda n, c, h: (0, c)),
            pl.BlockSpec((K, K, TC), lambda n, c, h: (0, 0, c)),
            pl.BlockSpec((1, TC), lambda n, c, h: (0, c)),
        ]
        inputs = (x_nhwc, w_pw_s, shift1, w_dw_s, shift2)
    else:
        in_specs = [
            pl.BlockSpec((1, H, W, TC), lambda n, c, h: (n, 0, 0, c)),
            pl.BlockSpec((K, K, TC), lambda n, c, h: (0, 0, c)),
            pl.BlockSpec((1, TC), lambda n, c, h: (0, c)),
        ]
        inputs = (x_nhwc, w_dw_s, shift2)

    # Scoped-VMEM estimate: double-buffered in/out blocks + scratch + stage-1/strip temporaries,
    # capped by a per-generation budget (never the full physical VMEM).
    isz = lambda dt: jnp.dtype(dt).itemsize
    bytes_x = H * W * (Cin if has_expand else TC) * isz(cdt)
    bytes_w = (Cin * TC * isz(cdt) if has_expand else 0) + (K * K + 2) * TC * 4
    bytes_out = TH * Wo * TC * isz(out_dtype)
    bytes_scratch = Hp_alloc * Wp * TC * isz(sdt)
    bytes_stage1 = 2 * H * Wp * TC * 4
    bytes_strip = 4 * TH * Wo * TC * 4
    est = 2 * (bytes_x + bytes_w + bytes_out) + bytes_scratch + bytes_stage1 + bytes_strip \
        + (2 << 20)
    vmem_limit = int(min(_vmem_budget_bytes(), max(2 * est, 32 * 2**20)))

    out_nhwc = pl.pallas_call(
        kern,
        out_shape=jax.ShapeDtypeStruct((N, Ho, Wo, Cexp), out_dtype),
        grid_spec=pltpu.PrefetchScalarGridSpec(
            num_scalar_prefetch=0,
            grid=(N, c_tiles, h_strips),
            in_specs=in_specs,
            out_specs=pl.BlockSpec((1, TH, Wo, TC), lambda n, c, h: (n, h, 0, c)),
            scratch_shapes=[pltpu.VMEM((Hp_alloc, Wp, TC), sdt)],
        ),
        compiler_params=pltpu.CompilerParams(
            # The row-strip axis carries the scratch within an (n, c) pair -> "arbitrary".
            dimension_semantics=("parallel", "parallel", "arbitrary"),
            vmem_limit_bytes=vmem_limit,
        ),
    )(*inputs)

    if data_format == "NCHW":
        return jnp.transpose(out_nhwc, (0, 3, 1, 2))
    return out_nhwc


def _fold_bn(gamma, beta, mean, var, eps=1e-5):
    scale = gamma / jnp.sqrt(var + eps)
    shift = beta - mean * scale
    return scale, shift


def _reference(x_nchw, params, *, expanded_channels, kernel_size, stride, dilation):
    """Plain-JAX NCHW reference mirroring the PyTorch module (BN in eval mode)."""
    K = kernel_size
    stride = 1 if dilation > 1 else stride
    pad = K // 2
    x = jnp.transpose(x_nchw, (0, 2, 3, 1))
    if expanded_channels != x.shape[-1]:
        y = jnp.einsum("nhwi,io->nhwo", x, params["w_pw"])
        y = jnp.maximum(y * params["scale1"] + params["shift1"], 0.0)
    else:
        y = x
    C = y.shape[-1]
    z = lax.conv_general_dilated(
        y, params["w_dw"].reshape(K, K, 1, C),
        window_strides=(stride, stride),
        padding=((pad, pad), (pad, pad)),
        rhs_dilation=(dilation, dilation),
        dimension_numbers=("NHWC", "HWIO", "NHWC"),
        feature_group_count=C)
    z = jnp.maximum(z * params["scale2"] + params["shift2"], 0.0)
    return jnp.transpose(z, (0, 3, 1, 2))


if __name__ == "__main__":
    N, Cin, H, W = 2, 4, 16, 16
    Cexp, K = 8, 3
    eps = 1e-5

    key = jax.random.PRNGKey(0)
    keys = jax.random.split(key, 18)

    x_nchw = jax.random.normal(keys[0], (N, Cin, H, W), jnp.float32)

    # 1x1 expansion conv weight, stored (Cin, Cexp)  (PyTorch shape: (Cexp, Cin, 1, 1))
    w_pw = jax.random.normal(keys[1], (Cin, Cexp), jnp.float32) * 0.2
    gamma1 = jax.random.normal(keys[2], (Cexp,), jnp.float32) * 0.1 + 1.0
    beta1 = jax.random.normal(keys[3], (Cexp,), jnp.float32) * 0.1
    mean1 = jax.random.normal(keys[4], (Cexp,), jnp.float32) * 0.1
    var1 = jnp.abs(jax.random.normal(keys[5], (Cexp,), jnp.float32)) + 0.5

    # depthwise conv weight, stored (K, K, Cexp)  (PyTorch shape: (Cexp, 1, K, K))
    w_dw = jax.random.normal(keys[6], (K, K, Cexp), jnp.float32) * 0.2
    gamma2 = jax.random.normal(keys[7], (Cexp,), jnp.float32) * 0.1 + 1.0
    beta2 = jax.random.normal(keys[8], (Cexp,), jnp.float32) * 0.1
    mean2 = jax.random.normal(keys[9], (Cexp,), jnp.float32) * 0.1
    var2 = jnp.abs(jax.random.normal(keys[10], (Cexp,), jnp.float32)) + 0.5

    scale1, shift1 = _fold_bn(gamma1, beta1, mean1, var1, eps)
    scale2, shift2 = _fold_bn(gamma2, beta2, mean2, var2, eps)
    params = dict(w_pw=w_pw, scale1=scale1, shift1=shift1,
                  w_dw=w_dw, scale2=scale2, shift2=shift2)

    run = partial(depthwise_conv_block, input_channels=Cin, expanded_channels=Cexp,
                  kernel_size=K)
    ref_fn = partial(_reference, expanded_channels=Cexp, kernel_size=K)

    # ---- Config 1: expansion path, full f32 (tight numerical check) --------------------------
    out = jax.block_until_ready(run(x_nchw, params, stride=1, dilation=1,
                                    compute_dtype=jnp.float32, scratch_dtype=jnp.float32))
    ref = ref_fn(x_nchw, params, stride=1, dilation=1)
    assert out.shape == (N, Cexp, H, W), out.shape
    assert jnp.allclose(out, ref, rtol=1e-4, atol=2e-4), float(jnp.max(jnp.abs(out - ref)))

    # ---- Config 2: dilation=2 (exercises the partial last row strip), full f32 ---------------
    out_d = jax.block_until_ready(run(x_nchw, params, stride=1, dilation=2,
                                      compute_dtype=jnp.float32, scratch_dtype=jnp.float32))
    ref_d = ref_fn(x_nchw, params, stride=1, dilation=2)
    assert out_d.shape == (N, Cexp, H - 2, W - 2), out_d.shape
    assert jnp.allclose(out_d, ref_d, rtol=1e-4, atol=2e-4), \
        float(jnp.max(jnp.abs(out_d - ref_d)))

    # ---- Config 3: default mixed precision (bf16 MXU feed + bf16 scratch) --------------------
    out_bf = jax.block_until_ready(run(x_nchw, params, stride=1, dilation=1))
    assert jnp.allclose(out_bf, ref, rtol=5e-2, atol=1e-1), \
        float(jnp.max(jnp.abs(out_bf - ref)))

    # ---- Config 4: no-expansion path (Cin == Cexp -> the 1x1 stage is skipped), full f32 -----
    Cin2 = Cexp2 = 8
    x2 = jax.random.normal(keys[11], (N, Cin2, H, W), jnp.float32)
    w_dw2 = jax.random.normal(keys[12], (K, K, Cexp2), jnp.float32) * 0.2
    g2 = jax.random.normal(keys[13], (Cexp2,), jnp.float32) * 0.1 + 1.0
    b2 = jax.random.normal(keys[14], (Cexp2,), jnp.float32) * 0.1
    m2 = jax.random.normal(keys[15], (Cexp2,), jnp.float32) * 0.1
    v2 = jnp.abs(jax.random.normal(keys[16], (Cexp2,), jnp.float32)) + 0.5
    s2, sh2 = _fold_bn(g2, b2, m2, v2, eps)
    params2 = dict(w_dw=w_dw2, scale2=s2, shift2=sh2)

    out2 = jax.block_until_ready(
        depthwise_conv_block(x2, params2, input_channels=Cin2, expanded_channels=Cexp2,
                             kernel_size=K, stride=1, dilation=1,
                             compute_dtype=jnp.float32, scratch_dtype=jnp.float32))
    ref2 = _reference(x2, params2, expanded_channels=Cexp2, kernel_size=K,
                      stride=1, dilation=1)
    assert jnp.allclose(out2, ref2, rtol=1e-4, atol=2e-4), \
        float(jnp.max(jnp.abs(out2 - ref2)))

    print("KERNEL_OK")
</pallas_src>

<mosaic_0001>
module attributes {stable_mosaic.version = 11 : i64} {
  func.func @_fused_dwconv_kernel(%arg0: i32, %arg1: i32, %arg2: i32, %arg3: memref<1x16x16x4xf32, #tpu.memory_space<vmem>>, %arg4: memref<4x8xf32, #tpu.memory_space<vmem>>, %arg5: memref<1x8xf32, #tpu.memory_space<vmem>>, %arg6: memref<3x3x8xf32, #tpu.memory_space<vmem>>, %arg7: memref<1x8xf32, #tpu.memory_space<vmem>>, %arg8: memref<1x8x16x8xf32, #tpu.memory_space<vmem>>, %arg9: memref<18x18x8xf32, #tpu.memory_space<vmem>>) attributes {dimension_semantics = [#tpu.dimension_semantics<parallel>, #tpu.dimension_semantics<parallel>, #tpu.dimension_semantics<arbitrary>], iteration_bounds = array<i64: 2, 1, 2>, scalar_prefetch = 0 : i64, scratch_operands = 1 : i64, tpu.core_type = #tpu.core_type<tc>, window_params = [{transform_indices = @transform_0, window_bounds = array<i64: 1, 16, 16, 4>}, {transform_indices = @transform_1, window_bounds = array<i64: 4, 8>}, {transform_indices = @transform_2, window_bounds = array<i64: 1, 8>}, {transform_indices = @transform_3, window_bounds = array<i64: 3, 3, 8>}, {transform_indices = @transform_4, window_bounds = array<i64: 1, 8>}, {transform_indices = @transform_5, window_bounds = array<i64: 1, 8, 16, 8>}]} {
    %c0_i32 = arith.constant 0 : i32
    %0 = arith.cmpi eq, %arg2, %c0_i32 : i32
    %1 = arith.extui %0 : i1 to i32
    %c0_i32_0 = arith.constant 0 : i32
    %2 = arith.cmpi ne, %1, %c0_i32_0 : i32
    scf.if %2 {
      %c0_32 = arith.constant 0 : index
      %c0_33 = arith.constant 0 : index
      %c0_34 = arith.constant 0 : index
      %c0_35 = arith.constant 0 : index
      %96 = vector.load %arg3[%c0_32, %c0_33, %c0_34, %c0_35] : memref<1x16x16x4xf32, #tpu.memory_space<vmem>>, vector<1x16x16x4xf32>
      %97 = vector.shape_cast %96 : vector<1x16x16x4xf32> to vector<16x16x4xf32>
      %98 = vector.shape_cast %97 : vector<16x16x4xf32> to vector<256x4xf32>
      %c0_36 = arith.constant 0 : index
      %c0_37 = arith.constant 0 : index
      %99 = vector.load %arg4[%c0_36, %c0_37] : memref<4x8xf32, #tpu.memory_space<vmem>>, vector<4x8xf32>
      %cst_38 = arith.constant dense<0.000000e+00> : vector<256x8xf32>
      %100 = tpu.matmul %98, %99, %cst_38 {dimension_numbers = #tpu.dot_dimension_numbers<[1], [0], [0], [1], [0, 0, 1, 1], [], []>} : vector<256x4xf32>, vector<4x8xf32>, vector<256x8xf32> -> vector<256x8xf32>
      %c0_39 = arith.constant 0 : index
      %c0_40 = arith.constant 0 : index
      %101 = vector.load %arg5[%c0_39, %c0_40] : memref<1x8xf32, #tpu.memory_space<vmem>>, vector<1x8xf32>
      %102 = vector.broadcast %101 : vector<1x8xf32> to vector<256x8xf32>
      %103 = arith.addf %100, %102 : vector<256x8xf32>
      %cst_41 = arith.constant 0.000000e+00 : f32
      %104 = vector.broadcast %cst_41 : f32 to vector<256x8xf32>
      %105 = arith.maximumf %103, %104 : vector<256x8xf32>
      %106 = vector.shape_cast %105 : vector<256x8xf32> to vector<16x16x8xf32>
      %cst_42 = arith.constant 0.000000e+00 : f32
      %107 = vector.broadcast %cst_42 : f32 to vector<16x1x8xf32>
      %108 = tpu.concatenate %107, %106, %107 in 1 : vector<16x1x8xf32>, vector<16x16x8xf32>, vector<16x1x8xf32> -> vector<16x18x8xf32>
      %c1_43 = arith.constant 1 : index
      %c0_44 = arith.constant 0 : index
      %c0_45 = arith.constant 0 : index
      %109 = vector.load %arg9[%c1_43, %c0_44, %c0_45] : memref<18x18x8xf32, #tpu.memory_space<vmem>>, vector<16x18x8xf32>
      tpu.vector_store %arg9[%c1_43, %c0_44, %c0_45], %108 {strides = array<i32>} : memref<18x18x8xf32, #tpu.memory_space<vmem>>, vector<16x18x8xf32>,
      %cst_46 = arith.constant 0.000000e+00 : f32
      %110 = vector.broadcast %cst_46 : f32 to vector<1x18x8xf32>
      %c0_47 = arith.constant 0 : index
      %c0_48 = arith.constant 0 : index
      %c0_49 = arith.constant 0 : index
      %111 = vector.load %arg9[%c0_47, %c0_48, %c0_49] : memref<18x18x8xf32, #tpu.memory_space<vmem>>, vector<1x18x8xf32>
      tpu.vector_store %arg9[%c0_47, %c0_48, %c0_49], %110 {strides = array<i32>} : memref<18x18x8xf32, #tpu.memory_space<vmem>>, vector<1x18x8xf32>,
      %cst_50 = arith.constant 0.000000e+00 : f32
      %112 = vector.broadcast %cst_50 : f32 to vector<1x18x8xf32>
      %c17 = arith.constant 17 : index
      %c0_51 = arith.constant 0 : index
      %c0_52 = arith.constant 0 : index
      %113 = vector.load %arg9[%c17, %c0_51, %c0_52] : memref<18x18x8xf32, #tpu.memory_space<vmem>>, vector<1x18x8xf32>
      tpu.vector_store %arg9[%c17, %c0_51, %c0_52], %112 {strides = array<i32>} : memref<18x18x8xf32, #tpu.memory_space<vmem>>, vector<1x18x8xf32>,
    } else {
    }
    %c0 = arith.constant 0 : index
    %c0_1 = arith.constant 0 : index
    %c0_2 = arith.constant 0 : index
    %3 = vector.load %arg6[%c0, %c0_1, %c0_2] : memref<3x3x8xf32, #tpu.memory_space<vmem>>, vector<3x3x8xf32>
    %c8_i32 = arith.constant 8 : i32
    %4 = arith.muli %arg2, %c8_i32 : i32
    %5 = tpu.assume_multiple %4, 8 : i32
    %c0_3 = arith.constant 0 : index
    %c0_4 = arith.constant 0 : index
    %6 = vector.load %arg7[%c0_3, %c0_4] : memref<1x8xf32, #tpu.memory_space<vmem>>, vector<1x8xf32>
    %7 = vector.shape_cast %6 : vector<1x8xf32> to vector<1x1x8xf32>
    %8 = vector.shape_cast %7 : vector<1x1x8xf32> to vector<1x1x8xf32>
    %9 = vector.broadcast %8 : vector<1x1x8xf32> to vector<8x16x8xf32>
    %c0_i32_5 = arith.constant 0 : i32
    %10 = arith.addi %5, %c0_i32_5 : i32
    %11 = arith.index_cast %10 : i32 to index
    %c0_6 = arith.constant 0 : index
    %c0_7 = arith.constant 0 : index
    %12 = vector.load %arg9[%11, %c0_6, %c0_7] : memref<18x18x8xf32, #tpu.memory_space<vmem>>, vector<8x16x8xf32>
    %13 = vector.extract_strided_slice %3 {offsets = [0, 0, 0], sizes = [1, 1, 8], strides = [1, 1, 1]} : vector<3x3x8xf32> to vector<1x1x8xf32>
    %14 = vector.shape_cast %13 : vector<1x1x8xf32> to vector<8xf32>
    %15 = vector.shape_cast %14 : vector<8xf32> to vector<1x1x8xf32>
    %16 = vector.broadcast %15 : vector<1x1x8xf32> to vector<8x16x8xf32>
    %17 = arith.mulf %12, %16 : vector<8x16x8xf32>
    %18 = arith.addf %9, %17 : vector<8x16x8xf32>
    %c0_i32_8 = arith.constant 0 : i32
    %19 = arith.addi %5, %c0_i32_8 : i32
    %20 = arith.index_cast %19 : i32 to index
    %c1 = arith.constant 1 : index
    %c0_9 = arith.constant 0 : index
    %21 = vector.load %arg9[%20, %c1, %c0_9] : memref<18x18x8xf32, #tpu.memory_space<vmem>>, vector<8x16x8xf32>
    %22 = vector.extract_strided_slice %3 {offsets = [0, 1, 0], sizes = [1, 1, 8], strides = [1, 1, 1]} : vector<3x3x8xf32> to vector<1x1x8xf32>
    %23 = vector.shape_cast %22 : vector<1x1x8xf32> to vector<8xf32>
    %24 = vector.shape_cast %23 : vector<8xf32> to vector<1x1x8xf32>
    %25 = vector.broadcast %24 : vector<1x1x8xf32> to vector<8x16x8xf32>
    %26 = arith.mulf %21, %25 : vector<8x16x8xf32>
    %27 = arith.addf %18, %26 : vector<8x16x8xf32>
    %c0_i32_10 = arith.constant 0 : i32
    %28 = arith.addi %5, %c0_i32_10 : i32
    %29 = arith.index_cast %28 : i32 to index
    %c2 = arith.constant 2 : index
    %c0_11 = arith.constant 0 : index
    %30 = vector.load %arg9[%29, %c2, %c0_11] : memref<18x18x8xf32, #tpu.memory_space<vmem>>, vector<8x16x8xf32>
    %31 = vector.extract_strided_slice %3 {offsets = [0, 2, 0], sizes = [1, 1, 8], strides = [1, 1, 1]} : vector<3x3x8xf32> to vector<1x1x8xf32>
    %32 = vector.shape_cast %31 : vector<1x1x8xf32> to vector<8xf32>
    %33 = vector.shape_cast %32 : vector<8xf32> to vector<1x1x8xf32>
    %34 = vector.broadcast %33 : vector<1x1x8xf32> to vector<8x16x8xf32>
    %35 = arith.mulf %30, %34 : vector<8x16x8xf32>
    %36 = arith.addf %27, %35 : vector<8x16x8xf32>
    %c1_i32 = arith.constant 1 : i32
    %37 = arith.addi %5, %c1_i32 : i32
    %38 = arith.index_cast %37 : i32 to index
    %c0_12 = arith.constant 0 : index
    %c0_13 = arith.constant 0 : index
    %39 = vector.load %arg9[%38, %c0_12, %c0_13] : memref<18x18x8xf32, #tpu.memory_space<vmem>>, vector<8x16x8xf32>
    %40 = vector.extract_strided_slice %3 {offsets = [1, 0, 0], sizes = [1, 1, 8], strides = [1, 1, 1]} : vector<3x3x8xf32> to vector<1x1x8xf32>
    %41 = vector.shape_cast %40 : vector<1x1x8xf32> to vector<8xf32>
    %42 = vector.shape_cast %41 : vector<8xf32> to vector<1x1x8xf32>
    %43 = vector.broadcast %42 : vector<1x1x8xf32> to vector<8x16x8xf32>
    %44 = arith.mulf %39, %43 : vector<8x16x8xf32>
    %45 = arith.addf %36, %44 : vector<8x16x8xf32>
    %c1_i32_14 = arith.constant 1 : i32
    %46 = arith.addi %5, %c1_i32_14 : i32
    %47 = arith.index_cast %46 : i32 to index
    %c1_15 = arith.constant 1 : index
    %c0_16 = arith.constant 0 : index
    %48 = vector.load %arg9[%47, %c1_15, %c0_16] : memref<18x18x8xf32, #tpu.memory_space<vmem>>, vector<8x16x8xf32>
    %49 = vector.extract_strided_slice %3 {offsets = [1, 1, 0], sizes = [1, 1, 8], strides = [1, 1, 1]} : vector<3x3x8xf32> to vector<1x1x8xf32>
    %50 = vector.shape_cast %49 : vector<1x1x8xf32> to vector<8xf32>
    %51 = vector.shape_cast %50 : vector<8xf32> to vector<1x1x8xf32>
    %52 = vector.broadcast %51 : vector<1x1x8xf32> to vector<8x16x8xf32>
    %53 = arith.mulf %48, %52 : vector<8x16x8xf32>
    %54 = arith.addf %45, %53 : vector<8x16x8xf32>
    %c1_i32_17 = arith.constant 1 : i32
    %55 = arith.addi %5, %c1_i32_17 : i32
    %56 = arith.index_cast %55 : i32 to index
    %c2_18 = arith.constant 2 : index
    %c0_19 = arith.constant 0 : index
    %57 = vector.load %arg9[%56, %c2_18, %c0_19] : memref<18x18x8xf32, #tpu.memory_space<vmem>>, vector<8x16x8xf32>
    %58 = vector.extract_strided_slice %3 {offsets = [1, 2, 0], sizes = [1, 1, 8], strides = [1, 1, 1]} : vector<3x3x8xf32> to vector<1x1x8xf32>
    %59 = vector.shape_cast %58 : vector<1x1x8xf32> to vector<8xf32>
    %60 = vector.shape_cast %59 : vector<8xf32> to vector<1x1x8xf32>
    %61 = vector.broadcast %60 : vector<1x1x8xf32> to vector<8x16x8xf32>
    %62 = arith.mulf %57, %61 : vector<8x16x8xf32>
    %63 = arith.addf %54, %62 : vector<8x16x8xf32>
    %c2_i32 = arith.constant 2 : i32
    %64 = arith.addi %5, %c2_i32 : i32
    %65 = arith.index_cast %64 : i32 to index
    %c0_20 = arith.constant 0 : index
    %c0_21 = arith.constant 0 : index
    %66 = vector.load %arg9[%65, %c0_20, %c0_21] : memref<18x18x8xf32, #tpu.memory_space<vmem>>, vector<8x16x8xf32>
    %67 = vector.extract_strided_slice %3 {offsets = [2, 0, 0], sizes = [1, 1, 8], strides = [1, 1, 1]} : vector<3x3x8xf32> to vector<1x1x8xf32>
    %68 = vector.shape_cast %67 : vector<1x1x8xf32> to vector<8xf32>
    %69 = vector.shape_cast %68 : vector<8xf32> to vector<1x1x8xf32>
    %70 = vector.broadcast %69 : vector<1x1x8xf32> to vector<8x16x8xf32>
    %71 = arith.mulf %66, %70 : vector<8x16x8xf32>
    %72 = arith.addf %63, %71 : vector<8x16x8xf32>
    %c2_i32_22 = arith.constant 2 : i32
    %73 = arith.addi %5, %c2_i32_22 : i32
    %74 = arith.index_cast %73 : i32 to index
    %c1_23 = arith.constant 1 : index
    %c0_24 = arith.constant 0 : index
    %75 = vector.load %arg9[%74, %c1_23, %c0_24] : memref<18x18x8xf32, #tpu.memory_space<vmem>>, vector<8x16x8xf32>
    %76 = vector.extract_strided_slice %3 {offsets = [2, 1, 0], sizes = [1, 1, 8], strides = [1, 1, 1]} : vector<3x3x8xf32> to vector<1x1x8xf32>
    %77 = vector.shape_cast %76 : vector<1x1x8xf32> to vector<8xf32>
    %78 = vector.shape_cast %77 : vector<8xf32> to vector<1x1x8xf32>
    %79 = vector.broadcast %78 : vector<1x1x8xf32> to vector<8x16x8xf32>
    %80 = arith.mulf %75, %79 : vector<8x16x8xf32>
    %81 = arith.addf %72, %80 : vector<8x16x8xf32>
    %c2_i32_25 = arith.constant 2 : i32
    %82 = arith.addi %5, %c2_i32_25 : i32
    %83 = arith.index_cast %82 : i32 to index
    %c2_26 = arith.constant 2 : index
    %c0_27 = arith.constant 0 : index
    %84 = vector.load %arg9[%83, %c2_26, %c0_27] : memref<18x18x8xf32, #tpu.memory_space<vmem>>, vector<8x16x8xf32>
    %85 = vector.extract_strided_slice %3 {offsets = [2, 2, 0], sizes = [1, 1, 8], strides = [1, 1, 1]} : vector<3x3x8xf32> to vector<1x1x8xf32>
    %86 = vector.shape_cast %85 : vector<1x1x8xf32> to vector<8xf32>
    %87 = vector.shape_cast %86 : vector<8xf32> to vector<1x1x8xf32>
    %88 = vector.broadcast %87 : vector<1x1x8xf32> to vector<8x16x8xf32>
    %89 = arith.mulf %84, %88 : vector<8x16x8xf32>
    %90 = arith.addf %81, %89 : vector<8x16x8xf32>
    %cst = arith.constant 0.000000e+00 : f32
    %91 = vector.broadcast %cst : f32 to vector<8x16x8xf32>
    %92 = arith.maximumf %90, %91 : vector<8x16x8xf32>
    %c0_28 = arith.constant 0 : index
    %c0_29 = arith.constant 0 : index
    %c0_30 = arith.constant 0 : index
    %c0_31 = arith.constant 0 : index
    %93 = vector.load %arg8[%c0_28, %c0_29, %c0_30, %c0_31] : memref<1x8x16x8xf32, #tpu.memory_space<vmem>>, vector<1x8x16x8xf32>
    %94 = vector.shape_cast %93 : vector<1x8x16x8xf32> to vector<8x16x8xf32>
    %95 = vector.shape_cast %92 : vector<8x16x8xf32> to vector<1x8x16x8xf32>
    tpu.vector_store %arg8[%c0_28, %c0_29, %c0_30, %c0_31], %95 {strides = array<i32>} : memref<1x8x16x8xf32, #tpu.memory_space<vmem>>, vector<1x8x16x8xf32>,
    return
  }
  func.func @transform_0(%arg0: i32, %arg1: i32, %arg2: i32) -> (i32, i32, i32, i32) {
    %c0_i32 = arith.constant 0 : i32
    %c0_i32_0 = arith.constant 0 : i32
    %c0_i32_1 = arith.constant 0 : i32
    %c0_i32_2 = arith.constant 0 : i32
    return %arg0, %c0_i32, %c0_i32_0, %c0_i32_1 : i32, i32, i32, i32
  }
  func.func @transform_1(%arg0: i32, %arg1: i32, %arg2: i32) -> (i32, i32) {
    %c0_i32 = arith.constant 0 : i32
    %c0_i32_0 = arith.constant 0 : i32
    return %c0_i32, %arg1 : i32, i32
  }
  func.func @transform_2(%arg0: i32, %arg1: i32, %arg2: i32) -> (i32, i32) {
    %c0_i32 = arith.constant 0 : i32
    %c0_i32_0 = arith.constant 0 : i32
    return %c0_i32, %arg1 : i32, i32
  }
  func.func @transform_3(%arg0: i32, %arg1: i32, %arg2: i32) -> (i32, i32, i32) {
    %c0_i32 = arith.constant 0 : i32
    %c0_i32_0 = arith.constant 0 : i32
    %c0_i32_1 = arith.constant 0 : i32
    return %c0_i32, %c0_i32_0, %arg1 : i32, i32, i32
  }
  func.func @transform_4(%arg0: i32, %arg1: i32, %arg2: i32) -> (i32, i32) {
    %c0_i32 = arith.constant 0 : i32
    %c0_i32_0 = arith.constant 0 : i32
    return %c0_i32, %arg1 : i32, i32
  }
  func.func @transform_5(%arg0: i32, %arg1: i32, %arg2: i32) -> (i32, i32, i32, i32) {
    %c0_i32 = arith.constant 0 : i32
    %c0_i32_0 = arith.constant 0 : i32
    return %arg0, %arg2, %c0_i32, %arg1 : i32, i32, i32, i32
  }
}

</mosaic_0001>

<llo_original>
// kernel: tpu_custom_call.1
$region0: #{tpu_custom_call.1}
  #allocation0 [shape = 'u32[]', space=smem, size = 0x4, offset = 0x4, fixed_abs, tag = 'smem constant byte address 0x4 - core index']
  #allocation1 [shape = 'u32[144,128]{1,0:T(1,128)}', space=vmem, size = 0x12000, scoped, tag = 'internal scratch']
  #allocation2 [shape = 'f32[18,18,8]{2,1,0:T(8,128)}', space=vmem, size = 0x36000, scoped, tag = 'scratch operand']
  %s0 = inlined_call_operand.vmem [shape: f32[2,16,16,4], index: 0, kind: input, shape index: {}]
  %s1 = inlined_call_operand.vmem [shape: f32[4,8], index: 1, kind: input, shape index: {}]
  %s2 = inlined_call_operand.vmem [shape: f32[1,8], index: 2, kind: input, shape index: {}]
  %s3 = inlined_call_operand.vmem [shape: f32[3,3,8], index: 3, kind: input, shape index: {}]
  %s4 = inlined_call_operand.vmem [shape: f32[1,8], index: 4, kind: input, shape index: {}]
  %s5 = inlined_call_operand.vmem [shape: f32[2,16,16,8], index: 5, kind: output, shape index: {}]
  %s6 = sld [smem:[#allocation0]]
  $region57: #{tpu_custom_call.1} parent=0
    _
  %s8 = ssub.s32 1, %s6
  %s9 = scalar_select 0, %s8, %s6
  loop: start=0, step=1, limit=6
  $region2: #{tpu_custom_call.1} parent=0 // loop_pre_header
    _
  $region3: #{tpu_custom_call.1} parent=0 // loop_header
    %s11 = sphi 0, %s15
    %p12 = scmp.ge.s32.totalorder %s11, 6
    %s18 = sphi 0, %s37
    %s19 = sphi 0, %s33
    %s20 = sphi 0, %s29
    %s21 = sphi 0, %s18
    %s22 = sphi 0, %s19
    %s23 = sphi 0, %s20
    %s24 = sphi 0, %s21
    %s25 = sphi 0, %s22
    %s26 = sphi 0, %s23
    %s40 = sphi 0, %s42
    %s43 = sphi 0, %s40
    %s44 = sphi 0, %s43
    %s60 = sphi 0, %s44
    %s66 = sphi 0, %s68
    %s69 = sphi 0, %s66
    %s70 = sphi 0, %s69
    %s86 = sphi 0, %s70
    %s92 = sphi 0, %s94
    %s95 = sphi 0, %s92
    %s96 = sphi 0, %s95
    %s112 = sphi 0, %s96
    %s118 = sphi 0, %s120
    %s121 = sphi 0, %s118
    %s122 = sphi 0, %s121
    %s138 = sphi 0, %s122
    %s144 = sphi 0, %s146
    %s147 = sphi 0, %s144
    %s148 = sphi 0, %s147
    %s164 = sphi 0, %s148
    %s174 = sphi 0, %s176
    %s177 = sphi 0, %s174
    %s178 = sphi 0, %s177
    %s194 = sphi 0, %s178
  $region4: #{tpu_custom_call.1} parent=0 // loop_header_branch
    %14 = sbr.rel (%p12) target = $region8
  $region5: #{tpu_custom_call.1} parent=0 // loop_body
    %s16 = ssub.s32 %s11, 1
    %s17 = ssub.s32 %s11, 2
    %s27 = sadd.s32 1, %s20
    %p28 = scmp.ge.s32.totalorder %s27, 2
    %s29 = scalar_select %p28, 0, %s27
    %s30 = sadd.s32 1, %s19
    %s31 = scalar_select %p28, %s30, %s19
    %p32 = scmp.ge.s32.totalorder %s31, 1
    %s33 = scalar_select %p32, 0, %s31
    %s34 = sadd.s32 1, %s18
    %s35 = scalar_select %p32, %s34, %s18
    %p36 = scmp.ge.s32.totalorder %s35, 2
    %s37 = scalar_select %p36, 0, %s35
    %s38 = ssub.s32 %s18, %s37
    %p39 = scmp.eq.s32.totalorder %s38, 0
    %s41 = sadd.s32 %s40, 1
    %s42 = scalar_select %p39, %s40, %s41
    %p45 = pneg %p39
    %p46 = scmp.eq.s32.totalorder %s11, 3
    %p47 = por %p45, %p46
    %p48 = scmp.ne.s32.totalorder %s40, %s43
    %p49 = scmp.eq.s32.totalorder %s11, 0
    %p50 = por %p48, %p49
    %p51 = scmp.ne.s32.totalorder %s40, %s43
    %p52 = scmp.eq.s32.totalorder %s16, 3
    %p53 = por %p51, %p52
    %p54 = scmp.ne.s32.totalorder %s43, %s44
    %p55 = scmp.eq.s32.totalorder %s16, 0
    %p56 = por %p54, %p55
    %p57 = scmp.ne.s32.totalorder %s43, %s44
    %p58 = scmp.eq.s32.totalorder %s17, 3
    %p59 = por %p57, %p58
    %p61 = scmp.ne.s32.totalorder %s44, %s60
    %p62 = scmp.eq.s32.totalorder %s17, 0
    %p63 = por %p61, %p62
    %s64 = ssub.s32 %s19, %s33
    %p65 = scmp.eq.s32.totalorder %s64, 0
    %s67 = sadd.s32 %s66, 1
    %s68 = scalar_select %p65, %s66, %s67
    %p71 = pneg %p65
    %p72 = scmp.eq.s32.totalorder %s11, 3
    %p73 = por %p71, %p72
    %p74 = scmp.ne.s32.totalorder %s66, %s69
    %p75 = scmp.eq.s32.totalorder %s11, 0
    %p76 = por %p74, %p75
    %p77 = scmp.ne.s32.totalorder %s66, %s69
    %p78 = scmp.eq.s32.totalorder %s16, 3
    %p79 = por %p77, %p78
    %p80 = scmp.ne.s32.totalorder %s69, %s70
    %p81 = scmp.eq.s32.totalorder %s16, 0
    %p82 = por %p80, %p81
    %p83 = scmp.ne.s32.totalorder %s69, %s70
    %p84 = scmp.eq.s32.totalorder %s17, 3
    %p85 = por %p83, %p84
    %p87 = scmp.ne.s32.totalorder %s70, %s86
    %p88 = scmp.eq.s32.totalorder %s17, 0
    %p89 = por %p87, %p88
    %s90 = ssub.s32 %s19, %s33
    %p91 = scmp.eq.s32.totalorder %s90, 0
    %s93 = sadd.s32 %s92, 1
    %s94 = scalar_select %p91, %s92, %s93
    %p97 = pneg %p91
    %p98 = scmp.eq.s32.totalorder %s11, 3
    %p99 = por %p97, %p98
    %p100 = scmp.ne.s32.totalorder %s92, %s95
    %p101 = scmp.eq.s32.totalorder %s11, 0
    %p102 = por %p100, %p101
    %p103 = scmp.ne.s32.totalorder %s92, %s95
    %p104 = scmp.eq.s32.totalorder %s16, 3
    %p105 = por %p103, %p104
    %p106 = scmp.ne.s32.totalorder %s95, %s96
    %p107 = scmp.eq.s32.totalorder %s16, 0
    %p108 = por %p106, %p107
    %p109 = scmp.ne.s32.totalorder %s95, %s96
    %p110 = scmp.eq.s32.totalorder %s17, 3
    %p111 = por %p109, %p110
    %p113 = scmp.ne.s32.totalorder %s96, %s112
    %p114 = scmp.eq.s32.totalorder %s17, 0
    %p115 = por %p113, %p114
    %s116 = ssub.s32 %s19, %s33
    %p117 = scmp.eq.s32.totalorder %s116, 0
    %s119 = sadd.s32 %s118, 1
    %s120 = scalar_select %p117, %s118, %s119
    %p123 = pneg %p117
    %p124 = scmp.eq.s32.totalorder %s11, 3
    %p125 = por %p123, %p124
    %p126 = scmp.ne.s32.totalorder %s118, %s121
    %p127 = scmp.eq.s32.totalorder %s11, 0
    %p128 = por %p126, %p127
    %p129 = scmp.ne.s32.totalorder %s118, %s121
    %p130 = scmp.eq.s32.totalorder %s16, 3
    %p131 = por %p129, %p130
    %p132 = scmp.ne.s32.totalorder %s121, %s122
    %p133 = scmp.eq.s32.totalorder %s16, 0
    %p134 = por %p132, %p133
    %p135 = scmp.ne.s32.totalorder %s121, %s122
    %p136 = scmp.eq.s32.totalorder %s17, 3
    %p137 = por %p135, %p136
    %p139 = scmp.ne.s32.totalorder %s122, %s138
    %p140 = scmp.eq.s32.totalorder %s17, 0
    %p141 = por %p139, %p140
    %s142 = ssub.s32 %s19, %s33
    %p143 = scmp.eq.s32.totalorder %s142, 0
    %s145 = sadd.s32 %s144, 1
    %s146 = scalar_select %p143, %s144, %s145
    %p149 = pneg %p143
    %p150 = scmp.eq.s32.totalorder %s11, 3
    %p151 = por %p149, %p150
    %p152 = scmp.ne.s32.totalorder %s144, %s147
    %p153 = scmp.eq.s32.totalorder %s11, 0
    %p154 = por %p152, %p153
    %p155 = scmp.ne.s32.totalorder %s144, %s147
    %p156 = scmp.eq.s32.totalorder %s16, 3
    %p157 = por %p155, %p156
    %p158 = scmp.ne.s32.totalorder %s147, %s148
    %p159 = scmp.eq.s32.totalorder %s16, 0
    %p160 = por %p158, %p159
    %p161 = scmp.ne.s32.totalorder %s147, %s148
    %p162 = scmp.eq.s32.totalorder %s17, 3
    %p163 = por %p161, %p162
    %p165 = scmp.ne.s32.totalorder %s148, %s164
    %p166 = scmp.eq.s32.totalorder %s17, 0
    %p167 = por %p165, %p166
    %s168 = ssub.s32 %s18, %s37
    %s169 = ssub.s32 %s20, %s29
    %s170 = sor.u32 %s168, %s169
    %s171 = ssub.s32 %s19, %s33
    %s172 = sor.u32 %s170, %s171
    %p173 = scmp.eq.s32.totalorder %s172, 0
    %s175 = sadd.s32 %s174, 1
    %s176 = scalar_select %p173, %s174, %s175
    %p179 = pneg %p173
    %p180 = scmp.eq.s32.totalorder %s11, 3
    %p181 = por %p179, %p180
    %p182 = scmp.ne.s32.totalorder %s174, %s177
    %p183 = scmp.eq.s32.totalorder %s11, 0
    %p184 = por %p182, %p183
    %p185 = scmp.ne.s32.totalorder %s174, %s177
    %p186 = scmp.eq.s32.totalorder %s16, 3
    %p187 = por %p185, %p186
    %p188 = scmp.ne.s32.totalorder %s177, %s178
    %p189 = scmp.eq.s32.totalorder %s16, 0
    %p190 = por %p188, %p189
    %p191 = scmp.ne.s32.totalorder %s177, %s178
    %p192 = scmp.eq.s32.totalorder %s17, 3
    %p193 = por %p191, %p192
    %p195 = scmp.ne.s32.totalorder %s178, %s194
    %p196 = scmp.eq.s32.totalorder %s17, 0
    %p197 = por %p195, %p196
    %p198 = scmp.le.s32.totalorder 1, %s11
    %p199 = scmp.lt.s32.totalorder %s11, 5
    %p200 = pnand %p198, %p199
    %p201 = pneg %p200
    // Predicated region
    $region9: #{tpu_custom_call.1} parent=5 // pred_check
      _
    $region10: #{tpu_custom_call.1} parent=5 // pred_check_branch
      %203 = sbr.rel (%p200) target = $region12
    $region11: #{tpu_custom_call.1} parent=5 // pred_region
      %s204 = ssub.s32 %s11, 1
      // Predicated region
      $region13: #{tpu_custom_call.1} parent=11 // pred_check
        %p205 = pneg %p82
      $region14: #{tpu_custom_call.1} parent=11 // pred_check_branch
        %207 = sbr.rel (%p205) target = $region16
      $region15: #{tpu_custom_call.1} parent=11 // pred_region
        %p208 = scmp.lt.s32.totalorder %s22, 0
        %s209 = scalar_select %p208, %s22, 0
        %s210 = smul.addr %s209, 4
        %s211 = scalar_lea.vmem %s1, %s210
      $region16: #{tpu_custom_call.1} parent=11 // pred_fallthru
        _
      // Predicated region
      $region17: #{tpu_custom_call.1} parent=11 // pred_check
        %p212 = pneg %p108
      $region18: #{tpu_custom_call.1} parent=11 // pred_check_branch
        %214 = sbr.rel (%p212) target = $region20
      $region19: #{tpu_custom_call.1} parent=11 // pred_region
        %p215 = scmp.lt.s32.totalorder %s22, 0
        %s216 = scalar_select %p215, %s22, 0
        %s217 = scalar_lea.vmem %s2, %s216
      $region20: #{tpu_custom_call.1} parent=11 // pred_fallthru
        _
      // Predicated region
      $region21: #{tpu_custom_call.1} parent=11 // pred_check
        %p218 = pneg %p134
      $region22: #{tpu_custom_call.1} parent=11 // pred_check_branch
        %220 = sbr.rel (%p218) target = $region24
      $region23: #{tpu_custom_call.1} parent=11 // pred_region
        %p221 = scmp.lt.s32.totalorder %s22, 0
        %s222 = scalar_select %p221, %s22, 0
        %s223 = smul.addr %s222, 4
        %s224 = scalar_lea.vmem %s3, %s223
      $region24: #{tpu_custom_call.1} parent=11 // pred_fallthru
        _
      // Predicated region
      $region25: #{tpu_custom_call.1} parent=11 // pred_check
        %p225 = pneg %p160
      $region26: #{tpu_custom_call.1} parent=11 // pred_check_branch
        %227 = sbr.rel (%p225) target = $region28
      $region27: #{tpu_custom_call.1} parent=11 // pred_region
        %p228 = scmp.lt.s32.totalorder %s22, 0
        %s229 = scalar_select %p228, %s22, 0
        %s230 = scalar_lea.vmem %s4, %s229
      $region28: #{tpu_custom_call.1} parent=11 // pred_fallthru
        _
    $region12: #{tpu_custom_call.1} parent=5 // pred_fallthru
      _
    %p231 = scmp.lt.s32.totalorder %s11, 4
    // Predicated region
    $region29: #{tpu_custom_call.1} parent=5 // pred_check
      %p232 = pneg %p231
    $region30: #{tpu_custom_call.1} parent=5 // pred_check_branch
      %234 = sbr.rel (%p232) target = $region32
    $region31: #{tpu_custom_call.1} parent=5 // pred_region
      // Predicated region
      $region33: #{tpu_custom_call.1} parent=31 // pred_check
        %p235 = pneg %p50
      $region34: #{tpu_custom_call.1} parent=31 // pred_check_branch
        %237 = sbr.rel (%p235) target = $region36
      $region35: #{tpu_custom_call.1} parent=31 // pred_region
        %p238 = scmp.lt.s32.totalorder %s18, 1
        %s239 = scalar_select %p238, %s18, 1
        %s240 = smul.addr %s239, 32
        %s241 = smul.addr %s240, 8
        %s242 = scalar_lea.vmem %s0, %s241
      $region36: #{tpu_custom_call.1} parent=31 // pred_fallthru
        _
    $region32: #{tpu_custom_call.1} parent=5 // pred_fallthru
      _
    %p243 = scmp.le.s32.totalorder 1, %s11
    %p244 = scmp.lt.s32.totalorder %s11, 5
    %p245 = pnand %p243, %p244
    %p246 = pneg %p245
    // Predicated region
    $region37: #{tpu_custom_call.1} parent=5 // pred_check
      _
    $region38: #{tpu_custom_call.1} parent=5 // pred_check_branch
      %248 = sbr.rel (%p245) target = $region40
    $region39: #{tpu_custom_call.1} parent=5 // pred_region
      %s249 = ssub.s32 %s11, 1
      %p250 = scmp.lt.s32.totalorder %s21, 1
      %s251 = scalar_select %p250, %s21, 1
      %s252 = smul.addr %s251, 32
      %s253 = smul.addr %s252, 8
      %s254 = scalar_lea.vmem %s0, %s253
      %p255 = pneg %p56
      %p256 = pneg %p53
      %p257 = scmp.lt.s32.totalorder %s22, 0
      %s258 = scalar_select %p257, %s22, 0
      %s259 = smul.addr %s258, 4
      %s260 = scalar_lea.vmem %s1, %s259
      %p261 = pneg %p82
      %p262 = pneg %p79
      %p263 = scmp.lt.s32.totalorder %s22, 0
      %s264 = scalar_select %p263, %s22, 0
      %s265 = scalar_lea.vmem %s2, %s264
      %p266 = pneg %p108
      %p267 = pneg %p105
      %p268 = scmp.lt.s32.totalorder %s22, 0
      %s269 = scalar_select %p268, %s22, 0
      %s270 = smul.addr %s269, 4
      %s271 = scalar_lea.vmem %s3, %s270
      %p272 = pneg %p134
      %p273 = pneg %p131
      %p274 = scmp.lt.s32.totalorder %s22, 0
      %s275 = scalar_select %p274, %s22, 0
      %s276 = scalar_lea.vmem %s4, %s275
      %p277 = pneg %p160
      %p278 = pneg %p157
      %p279 = pneg %p190
      %p280 = pneg %p187
      %s281 = smul.u32 8, %s23
      %p282 = scmp.lt.s32.totalorder %s21, 1
      %s283 = scalar_select %p282, %s21, 1
      %p284 = scmp.lt.s32.totalorder %s281, 15
      %s285 = scalar_select %p284, %s281, 15
      %p286 = scmp.lt.s32.totalorder %s22, 0
      %s287 = scalar_select %p286, %s22, 0
      %s288 = smul.addr %s285, 2
      %s289 = sadd.s32 %s287, %s288
      %s290 = smul.addr %s283, 32
      %s291 = sadd.s32 %s289, %s290
      %s292 = smul.addr %s291, 8
      %s293 = scalar_lea.vmem %s5, %s292
      %p294 = scmp.lt.s32.totalorder %s21, 1
      %s295 = scalar_select %p294, %s21, 1
      %s296 = smul.addr %s295, 32
      %s297 = smul.addr %s296, 8
      %s298 = scalar_lea.vmem %s0, %s297
      %p299 = scmp.lt.s32.totalorder %s22, 0
      %s300 = scalar_select %p299, %s22, 0
      %s301 = smul.addr %s300, 4
      %s302 = scalar_lea.vmem %s1, %s301
      %p303 = scmp.lt.s32.totalorder %s22, 0
      %s304 = scalar_select %p303, %s22, 0
      %s305 = scalar_lea.vmem %s2, %s304
      %p306 = scmp.lt.s32.totalorder %s22, 0
      %s307 = scalar_select %p306, %s22, 0
      %s308 = smul.addr %s307, 4
      %s309 = scalar_lea.vmem %s3, %s308
      %p310 = scmp.lt.s32.totalorder %s22, 0
      %s311 = scalar_select %p310, %s22, 0
      %s312 = scalar_lea.vmem %s4, %s311
      %s313 = smul.u32 8, %s23
      %p314 = scmp.lt.s32.totalorder %s21, 1
      %s315 = scalar_select %p314, %s21, 1
      %p316 = scmp.lt.s32.totalorder %s313, 15
      %s317 = scalar_select %p316, %s313, 15
      %p318 = scmp.lt.s32.totalorder %s22, 0
      %s319 = scalar_select %p318, %s22, 0
      %s320 = smul.addr %s317, 2
      %s321 = sadd.s32 %s319, %s320
      %s322 = smul.addr %s315, 32
      %s323 = sadd.s32 %s321, %s322
      %s324 = smul.addr %s323, 8
      %s325 = scalar_lea.vmem %s5, %s324
      %s326 = smul.u32 8, %s23
      %p327 = scmp.eq.s32.totalorder %s23, 0
      // Predicated region
      $region41: #{tpu_custom_call.1} parent=39 // pred_check
        %p328 = pneg %p327
      $region42: #{tpu_custom_call.1} parent=39 // pred_check_branch
        %330 = sbr.rel (%p328) target = $region44
      $region43: #{tpu_custom_call.1} parent=39 // pred_region
        %v331 = vld [vmem:[%s298] sm:$0xff]
        %v332 = vld [vmem:[%s298 + $0x8] sm:$0xff]
        %v333 = vld [vmem:[%s298 + $0x10] sm:$0xff]
        %v334 = vld [vmem:[%s298 + $0x18] sm:$0xff]
        %v335 = vld [vmem:[%s298 + $0x20] sm:$0xff]
        %v336 = vld [vmem:[%s298 + $0x28] sm:$0xff]
        %v337 = vld [vmem:[%s298 + $0x30] sm:$0xff]
        %v338 = vld [vmem:[%s298 + $0x38] sm:$0xff]
        %v339 = vld [vmem:[%s298 + $0x40] sm:$0xff]
        %v340 = vld [vmem:[%s298 + $0x48] sm:$0xff]
        %v341 = vld [vmem:[%s298 + $0x50] sm:$0xff]
        %v342 = vld [vmem:[%s298 + $0x58] sm:$0xff]
        %v343 = vld [vmem:[%s298 + $0x60] sm:$0xff]
        %v344 = vld [vmem:[%s298 + $0x68] sm:$0xff]
        %v345 = vld [vmem:[%s298 + $0x70] sm:$0xff]
        %v346 = vld [vmem:[%s298 + $0x78] sm:$0xff]
        %v347 = vld [vmem:[%s298 + $0x80] sm:$0xff]
        %v348 = vld [vmem:[%s298 + $0x88] sm:$0xff]
        %v349 = vld [vmem:[%s298 + $0x90] sm:$0xff]
        %v350 = vld [vmem:[%s298 + $0x98] sm:$0xff]
        %v351 = vld [vmem:[%s298 + $0xa0] sm:$0xff]
        %v352 = vld [vmem:[%s298 + $0xa8] sm:$0xff]
        %v353 = vld [vmem:[%s298 + $0xb0] sm:$0xff]
        %v354 = vld [vmem:[%s298 + $0xb8] sm:$0xff]
        %v355 = vld [vmem:[%s298 + $0xc0] sm:$0xff]
        %v356 = vld [vmem:[%s298 + $0xc8] sm:$0xff]
        %v357 = vld [vmem:[%s298 + $0xd0] sm:$0xff]
        %v358 = vld [vmem:[%s298 + $0xd8] sm:$0xff]
        %v359 = vld [vmem:[%s298 + $0xe0] sm:$0xff]
        %v360 = vld [vmem:[%s298 + $0xe8] sm:$0xff]
        %v361 = vld [vmem:[%s298 + $0xf0] sm:$0xff]
        %v362 = vld [vmem:[%s298 + $0xf8] sm:$0xff]
        %v363 = vld [vmem:[%s302] sm:$0xf]
        %v364 = vld [vmem:[%s305] sm:$0x1]
        %v366 = vlaneseq
        %v367 = vshrl.u32 %v366, 7
        %v368 = vsub.s32 0, %v367
        %v369 = vrot.slane %v364, %v368
        %vm371 = vcmask 31744
        %v373 = vsel %vm371, %v331, 0
        %v376 = vsel %vm371, %v332, 0
        %v379 = vsel %vm371, %v333, 0
        %v382 = vsel %vm371, %v334, 0
        %v385 = vsel %vm371, %v335, 0
        %v388 = vsel %vm371, %v336, 0
        %v391 = vsel %vm371, %v337, 0
        %v394 = vsel %vm371, %v338, 0
        %v397 = vsel %vm371, %v339, 0
        %v400 = vsel %vm371, %v340, 0
        %v403 = vsel %vm371, %v341, 0
        %v406 = vsel %vm371, %v342, 0
        %v409 = vsel %vm371, %v343, 0
        %v412 = vsel %vm371, %v344, 0
        %v415 = vsel %vm371, %v345, 0
        %v418 = vsel %vm371, %v346, 0
        %v421 = vsel %vm371, %v347, 0
        %v424 = vsel %vm371, %v348, 0
        %v427 = vsel %vm371, %v349, 0
        %v430 = vsel %vm371, %v350, 0
        %v433 = vsel %vm371, %v351, 0
        %v436 = vsel %vm371, %v352, 0
        %v439 = vsel %vm371, %v353, 0
        %v442 = vsel %vm371, %v354, 0
        %v445 = vsel %vm371, %v355, 0
        %v448 = vsel %vm371, %v356, 0
        %v451 = vsel %vm371, %v357, 0
        %v454 = vsel %vm371, %v358, 0
        %v457 = vsel %vm371, %v359, 0
        %v460 = vsel %vm371, %v360, 0
        %v463 = vsel %vm371, %v361, 0
        %v466 = vsel %vm371, %v362, 0
        %vm468 = vcmask 1043456
        %v470 = vsel %vm468, %v363, 0
        %472 = vmatprep.subr.mxu0 0.0
        %473 = vmatpush1.msra.mxu0 %v470
        %474 = vmatprep.subr.mxu0 0.0
        %475 = vmatpush1.msra.mxu0 0.0
        %476 = vmatprep.subr.mxu0 0.0
        %477 = vmatpush1.msra.mxu0 0.0
        %478 = vmatprep.subr.mxu0 0.0
        %479 = vmatpush1.msra.mxu0 0.0
        %480 = vmatprep.subr.mxu0 0.0
        %481 = vmatpush1.msra.mxu0 0.0
        %482 = vmatprep.subr.mxu0 0.0
        %483 = vmatpush1.msra.mxu0 0.0
        %484 = vmatprep.subr.mxu0 0.0
        %485 = vmatpush1.msra.mxu0 0.0
        %486 = vmatprep.subr.mxu0 0.0
        %487 = vmatpush1.msra.mxu0 0.0
        %488 = vmatprep.subr.mxu0 0.0
        %489 = vmatpush1.msra.mxu0 0.0
        %490 = vmatprep.subr.mxu0 0.0
        %491 = vmatpush1.msra.mxu0 0.0
        %492 = vmatprep.subr.mxu0 0.0
        %493 = vmatpush1.msra.mxu0 0.0
        %494 = vmatprep.subr.mxu0 0.0
        %495 = vmatpush1.msra.mxu0 0.0
        %496 = vmatprep.subr.mxu0 0.0
        %497 = vmatpush1.msra.mxu0 0.0
        %498 = vmatprep.subr.mxu0 0.0
        %499 = vmatpush1.msra.mxu0 0.0
        %500 = vmatprep.subr.mxu0 0.0
        %501 = vmatpush1.msra.mxu0 0.0
        %502 = vmatprep.subr.mxu0 0.0
        %503 = vmatpush1.msra.mxu0 0.0
        %504 = vmatprep.subr.mxu0 0.0
        %505 = vmatpush1.msra.mxu0 0.0
        %506 = vmatprep.subr.mxu0 0.0
        %507 = vmatpush1.msra.mxu0 0.0
        %508 = vmatprep.subr.mxu0 0.0
        %509 = vmatpush1.msra.mxu0 0.0
        %510 = vmatprep.subr.mxu0 0.0
        %511 = vmatpush1.msra.mxu0 0.0
        %512 = vmatprep.subr.mxu0 0.0
        %513 = vmatpush1.msra.mxu0 0.0
        %514 = vmatprep.subr.mxu0 0.0
        %515 = vmatpush1.msra.mxu0 0.0
        %516 = vmatprep.subr.mxu0 0.0
        %517 = vmatpush1.msra.mxu0 0.0
        %518 = vmatprep.subr.mxu0 0.0
        %519 = vmatpush1.msra.mxu0 0.0
        %520 = vmatprep.subr.mxu0 0.0
        %521 = vmatpush1.msra.mxu0 0.0
        %522 = vmatprep.subr.mxu0 0.0
        %523 = vmatpush1.msra.mxu0 0.0
        %524 = vmatprep.subr.mxu0 0.0
        %525 = vmatpush1.msra.mxu0 0.0
        %526 = vmatprep.subr.mxu0 0.0
        %527 = vmatpush1.msra.mxu0 0.0
        %528 = vmatprep.subr.mxu0 0.0
        %529 = vmatpush1.msra.mxu0 0.0
        %530 = vmatprep.subr.mxu0 0.0
        %531 = vmatpush1.msra.mxu0 0.0
        %532 = vmatprep.subr.mxu0 0.0
        %533 = vmatpush1.msra.mxu0 0.0
        %534 = vmatprep.subr.mxu0 0.0
        %535 = vmatpush1.msra.mxu0 0.0
        %536 = vmatprep.mubr.f32.mxu0 0.0
        %537 = vmatmul.mubr.f32.gmra.mrb[0].mxu0 %v373
        %v538 = vpop.f32.mrb[0].mxu0
        %v539 = vadd.f32 %v369, %v538
        %v540 = vpop.f32.mrb[0].mxu0
        %541 = vmatprep.mubr.f32.mxu0 0.0
        %542 = vmatmul.mubr.f32.gmra.mrb[0].mxu0 %v376
        %v543 = vpop.f32.mrb[0].mxu0
        %v544 = vadd.f32 %v369, %v543
        %v545 = vpop.f32.mrb[0].mxu0
        %546 = vmatprep.mubr.f32.mxu0 0.0
        %547 = vmatmul.mubr.f32.gmra.mrb[0].mxu0 %v379
        %v548 = vpop.f32.mrb[0].mxu0
        %v549 = vadd.f32 %v369, %v548
        %v550 = vpop.f32.mrb[0].mxu0
        %551 = vmatprep.mubr.f32.mxu0 0.0
        %552 = vmatmul.mubr.f32.gmra.mrb[0].mxu0 %v382
        %v553 = vpop.f32.mrb[0].mxu0
        %v554 = vadd.f32 %v369, %v553
        %v555 = vpop.f32.mrb[0].mxu0
        %556 = vmatprep.mubr.f32.mxu0 0.0
        %557 = vmatmul.mubr.f32.gmra.mrb[0].mxu0 %v385
        %v558 = vpop.f32.mrb[0].mxu0
        %v559 = vadd.f32 %v369, %v558
        %v560 = vpop.f32.mrb[0].mxu0
        %561 = vmatprep.mubr.f32.mxu0 0.0
        %562 = vmatmul.mubr.f32.gmra.mrb[0].mxu0 %v388
        %v563 = vpop.f32.mrb[0].mxu0
        %v564 = vadd.f32 %v369, %v563
        %v565 = vpop.f32.mrb[0].mxu0
        %566 = vmatprep.mubr.f32.mxu0 0.0
        %567 = vmatmul.mubr.f32.gmra.mrb[0].mxu0 %v391
        %v568 = vpop.f32.mrb[0].mxu0
        %v569 = vadd.f32 %v369, %v568
        %v570 = vpop.f32.mrb[0].mxu0
        %571 = vmatprep.mubr.f32.mxu0 0.0
        %572 = vmatmul.mubr.f32.gmra.mrb[0].mxu0 %v394
        %v573 = vpop.f32.mrb[0].mxu0
        %v574 = vadd.f32 %v369, %v573
        %v575 = vpop.f32.mrb[0].mxu0
        %576 = vmatprep.mubr.f32.mxu0 0.0
        %577 = vmatmul.mubr.f32.gmra.mrb[0].mxu0 %v397
        %v578 = vpop.f32.mrb[0].mxu0
        %v579 = vadd.f32 %v369, %v578
        %v580 = vpop.f32.mrb[0].mxu0
        %581 = vmatprep.mubr.f32.mxu0 0.0
        %582 = vmatmul.mubr.f32.gmra.mrb[0].mxu0 %v400
        %v583 = vpop.f32.mrb[0].mxu0
        %v584 = vadd.f32 %v369, %v583
        %v585 = vpop.f32.mrb[0].mxu0
        %586 = vmatprep.mubr.f32.mxu0 0.0
        %587 = vmatmul.mubr.f32.gmra.mrb[0].mxu0 %v403
        %v588 = vpop.f32.mrb[0].mxu0
        %v589 = vadd.f32 %v369, %v588
        %v590 = vpop.f32.mrb[0].mxu0
        %591 = vmatprep.mubr.f32.mxu0 0.0
        %592 = vmatmul.mubr.f32.gmra.mrb[0].mxu0 %v406
        %v593 = vpop.f32.mrb[0].mxu0
        %v594 = vadd.f32 %v369, %v593
        %v595 = vpop.f32.mrb[0].mxu0
        %596 = vmatprep.mubr.f32.mxu0 0.0
        %597 = vmatmul.mubr.f32.gmra.mrb[0].mxu0 %v409
        %v598 = vpop.f32.mrb[0].mxu0
        %v599 = vadd.f32 %v369, %v598
        %v600 = vpop.f32.mrb[0].mxu0
        %601 = vmatprep.mubr.f32.mxu0 0.0
        %602 = vmatmul.mubr.f32.gmra.mrb[0].mxu0 %v412
        %v603 = vpop.f32.mrb[0].mxu0
        %v604 = vadd.f32 %v369, %v603
        %v605 = vpop.f32.mrb[0].mxu0
        %606 = vmatprep.mubr.f32.mxu0 0.0
        %607 = vmatmul.mubr.f32.gmra.mrb[0].mxu0 %v415
        %v608 = vpop.f32.mrb[0].mxu0
        %v609 = vadd.f32 %v369, %v608
        %v610 = vpop.f32.mrb[0].mxu0
        %611 = vmatprep.mubr.f32.mxu0 0.0
        %612 = vmatmul.mubr.f32.gmra.mrb[0].mxu0 %v418
        %v613 = vpop.f32.mrb[0].mxu0
        %v614 = vadd.f32 %v369, %v613
        %v615 = vpop.f32.mrb[0].mxu0
        %616 = vmatprep.mubr.f32.mxu0 0.0
        %617 = vmatmul.mubr.f32.gmra.mrb[0].mxu0 %v421
        %v618 = vpop.f32.mrb[0].mxu0
        %v619 = vadd.f32 %v369, %v618
        %v620 = vpop.f32.mrb[0].mxu0
        %621 = vmatprep.mubr.f32.mxu0 0.0
        %622 = vmatmul.mubr.f32.gmra.mrb[0].mxu0 %v424
        %v623 = vpop.f32.mrb[0].mxu0
        %v624 = vadd.f32 %v369, %v623
        %v625 = vpop.f32.mrb[0].mxu0
        %626 = vmatprep.mubr.f32.mxu0 0.0
        %627 = vmatmul.mubr.f32.gmra.mrb[0].mxu0 %v427
        %v628 = vpop.f32.mrb[0].mxu0
        %v629 = vadd.f32 %v369, %v628
        %v630 = vpop.f32.mrb[0].mxu0
        %631 = vmatprep.mubr.f32.mxu0 0.0
        %632 = vmatmul.mubr.f32.gmra.mrb[0].mxu0 %v430
        %v633 = vpop.f32.mrb[0].mxu0
        %v634 = vadd.f32 %v369, %v633
        %v635 = vpop.f32.mrb[0].mxu0
        %636 = vmatprep.mubr.f32.mxu0 0.0
        %637 = vmatmul.mubr.f32.gmra.mrb[0].mxu0 %v433
        %v638 = vpop.f32.mrb[0].mxu0
        %v639 = vadd.f32 %v369, %v638
        %v640 = vpop.f32.mrb[0].mxu0
        %641 = vmatprep.mubr.f32.mxu0 0.0
        %642 = vmatmul.mubr.f32.gmra.mrb[0].mxu0 %v436
        %v643 = vpop.f32.mrb[0].mxu0
        %v644 = vadd.f32 %v369, %v643
        %v645 = vpop.f32.mrb[0].mxu0
        %646 = vmatprep.mubr.f32.mxu0 0.0
        %647 = vmatmul.mubr.f32.gmra.mrb[0].mxu0 %v439
        %v648 = vpop.f32.mrb[0].mxu0
        %v649 = vadd.f32 %v369, %v648
        %v650 = vpop.f32.mrb[0].mxu0
        %651 = vmatprep.mubr.f32.mxu0 0.0
        %652 = vmatmul.mubr.f32.gmra.mrb[0].mxu0 %v442
        %v653 = vpop.f32.mrb[0].mxu0
        %v654 = vadd.f32 %v369, %v653
        %v655 = vpop.f32.mrb[0].mxu0
        %656 = vmatprep.mubr.f32.mxu0 0.0
        %657 = vmatmul.mubr.f32.gmra.mrb[0].mxu0 %v445
        %v658 = vpop.f32.mrb[0].mxu0
        %v659 = vadd.f32 %v369, %v658
        %v660 = vpop.f32.mrb[0].mxu0
        %661 = vmatprep.mubr.f32.mxu0 0.0
        %662 = vmatmul.mubr.f32.gmra.mrb[0].mxu0 %v448
        %v663 = vpop.f32.mrb[0].mxu0
        %v664 = vadd.f32 %v369, %v663
        %v665 = vpop.f32.mrb[0].mxu0
        %666 = vmatprep.mubr.f32.mxu0 0.0
        %667 = vmatmul.mubr.f32.gmra.mrb[0].mxu0 %v451
        %v668 = vpop.f32.mrb[0].mxu0
        %v669 = vadd.f32 %v369, %v668
        %v670 = vpop.f32.mrb[0].mxu0
        %671 = vmatprep.mubr.f32.mxu0 0.0
        %672 = vmatmul.mubr.f32.gmra.mrb[0].mxu0 %v454
        %v673 = vpop.f32.mrb[0].mxu0
        %v674 = vadd.f32 %v369, %v673
        %v675 = vpop.f32.mrb[0].mxu0
        %676 = vmatprep.mubr.f32.mxu0 0.0
        %677 = vmatmul.mubr.f32.gmra.mrb[0].mxu0 %v457
        %v678 = vpop.f32.mrb[0].mxu0
        %v679 = vadd.f32 %v369, %v678
        %v680 = vpop.f32.mrb[0].mxu0
        %681 = vmatprep.mubr.f32.mxu0 0.0
        %682 = vmatmul.mubr.f32.gmra.mrb[0].mxu0 %v460
        %v683 = vpop.f32.mrb[0].mxu0
        %v684 = vadd.f32 %v369, %v683
        %v685 = vpop.f32.mrb[0].mxu0
        %686 = vmatprep.mubr.f32.mxu0 0.0
        %687 = vmatmul.mubr.f32.gmra.mrb[0].mxu0 %v463
        %v688 = vpop.f32.mrb[0].mxu0
        %v689 = vadd.f32 %v369, %v688
        %v690 = vpop.f32.mrb[0].mxu0
        %691 = vmatprep.mubr.f32.mxu0 0.0
        %692 = vmatmul.mubr.f32.gmra.mrb[0].mxu0 %v466
        %v693 = vpop.f32.mrb[0].mxu0
        %v694 = vadd.f32 %v369, %v693
        %v695 = vpop.f32.mrb[0].mxu0
        %696 = vdwg.mxu0
        %v697 = vmax.f32 %v539, 0.0
        %v698 = vmax.f32 %v544, 0.0
        %v699 = vmax.f32 %v549, 0.0
        %v700 = vmax.f32 %v554, 0.0
        %v701 = vmax.f32 %v559, 0.0
        %v702 = vmax.f32 %v564, 0.0
        %v703 = vmax.f32 %v569, 0.0
        %v704 = vmax.f32 %v574, 0.0
        %v705 = vmax.f32 %v579, 0.0
        %v706 = vmax.f32 %v584, 0.0
        %v707 = vmax.f32 %v589, 0.0
        %v708 = vmax.f32 %v594, 0.0
        %v709 = vmax.f32 %v599, 0.0
        %v710 = vmax.f32 %v604, 0.0
        %v711 = vmax.f32 %v609, 0.0
        %v712 = vmax.f32 %v614, 0.0
        %v713 = vmax.f32 %v619, 0.0
        %v714 = vmax.f32 %v624, 0.0
        %v715 = vmax.f32 %v629, 0.0
        %v716 = vmax.f32 %v634, 0.0
        %v717 = vmax.f32 %v639, 0.0
        %v718 = vmax.f32 %v644, 0.0
        %v719 = vmax.f32 %v649, 0.0
        %v720 = vmax.f32 %v654, 0.0
        %v721 = vmax.f32 %v659, 0.0
        %v722 = vmax.f32 %v664, 0.0
        %v723 = vmax.f32 %v669, 0.0
        %v724 = vmax.f32 %v674, 0.0
        %v725 = vmax.f32 %v679, 0.0
        %v726 = vmax.f32 %v684, 0.0
        %v727 = vmax.f32 %v689, 0.0
        %v728 = vmax.f32 %v694, 0.0
        %vm761 = vcmask 1040384
        %v762 = vrot.slane %v697, 7
        %v763 = vrot.slane %v698, 7
        %v764 = vsel %vm761, %v762, %v763
        %v765 = vrot.slane %v699, 7
        %v766 = vrot.slane %v700, 7
        %v767 = vsel %vm761, %v765, %v766
        %v768 = vrot.slane %v701, 7
        %v769 = vrot.slane %v702, 7
        %v770 = vsel %vm761, %v768, %v769
        %v771 = vrot.slane %v703, 7
        %v772 = vrot.slane %v704, 7
        %v773 = vsel %vm761, %v771, %v772
        %v774 = vrot.slane %v705, 7
        %v775 = vrot.slane %v706, 7
        %v776 = vsel %vm761, %v774, %v775
        %v777 = vrot.slane %v707, 7
        %v778 = vrot.slane %v708, 7
        %v779 = vsel %vm761, %v777, %v778
        %v780 = vrot.slane %v709, 7
        %v781 = vrot.slane %v710, 7
        %v782 = vsel %vm761, %v780, %v781
        %v783 = vrot.slane %v711, 7
        %v784 = vrot.slane %v712, 7
        %v785 = vsel %vm761, %v783, %v784
        %v786 = vrot.slane %v713, 7
        %v787 = vrot.slane %v714, 7
        %v788 = vsel %vm761, %v786, %v787
        %v789 = vrot.slane %v715, 7
        %v790 = vrot.slane %v716, 7
        %v791 = vsel %vm761, %v789, %v790
        %v792 = vrot.slane %v717, 7
        %v793 = vrot.slane %v718, 7
        %v794 = vsel %vm761, %v792, %v793
        %v795 = vrot.slane %v719, 7
        %v796 = vrot.slane %v720, 7
        %v797 = vsel %vm761, %v795, %v796
        %v798 = vrot.slane %v721, 7
        %v799 = vrot.slane %v722, 7
        %v800 = vsel %vm761, %v798, %v799
        %v801 = vrot.slane %v723, 7
        %v802 = vrot.slane %v724, 7
        %v803 = vsel %vm761, %v801, %v802
        %v804 = vrot.slane %v725, 7
        %v805 = vrot.slane %v726, 7
        %v806 = vsel %vm761, %v804, %v805
        %v807 = vrot.slane %v727, 7
        %v808 = vrot.slane %v728, 7
        %v809 = vsel %vm761, %v807, %v808
        %v858 = vsel %vm761, 0.0, %v762
        %v859 = vsel %vm761, 0.0, %v765
        %v860 = vsel %vm761, 0.0, %v768
        %v861 = vsel %vm761, 0.0, %v771
        %v862 = vsel %vm761, 0.0, %v774
        %v863 = vsel %vm761, 0.0, %v777
        %v864 = vsel %vm761, 0.0, %v780
        %v865 = vsel %vm761, 0.0, %v783
        %v866 = vsel %vm761, 0.0, %v786
        %v867 = vsel %vm761, 0.0, %v789
        %v868 = vsel %vm761, 0.0, %v792
        %v869 = vsel %vm761, 0.0, %v795
        %v870 = vsel %vm761, 0.0, %v798
        %v871 = vsel %vm761, 0.0, %v801
        %v872 = vsel %vm761, 0.0, %v804
        %v873 = vsel %vm761, 0.0, %v807
        %v874 = vsel %vm761, %v763, 0.0
        %v875 = vsel %vm761, %v766, 0.0
        %v876 = vsel %vm761, %v769, 0.0
        %v877 = vsel %vm761, %v772, 0.0
        %v878 = vsel %vm761, %v775, 0.0
        %v879 = vsel %vm761, %v778, 0.0
        %v880 = vsel %vm761, %v781, 0.0
        %v881 = vsel %vm761, %v784, 0.0
        %v882 = vsel %vm761, %v787, 0.0
        %v883 = vsel %vm761, %v790, 0.0
        %v884 = vsel %vm761, %v793, 0.0
        %v885 = vsel %vm761, %v796, 0.0
        %v886 = vsel %vm761, %v799, 0.0
        %v887 = vsel %vm761, %v802, 0.0
        %v888 = vsel %vm761, %v805, 0.0
        %v889 = vsel %vm761, %v808, 0.0
        %s890 = scalar_lea.vmem [#allocation2], 24
        %vm891 = vcmask 64512
        %892 = vst.msk [vmem:[%s890] sm:$0xff] %vm891, %v858
        %893 = vst.msk [vmem:[%s890 + $0x8] sm:$0xff] %vm891, %v764
        %vm894 = vcmask 58368
        %895 = vst.msk [vmem:[%s890 + $0x10] sm:$0x3] %vm894, %v874
        %896 = vst.msk [vmem:[%s890 + $0x18] sm:$0xff] %vm891, %v859
        %897 = vst.msk [vmem:[%s890 + $0x20] sm:$0xff] %vm891, %v767
        %898 = vst.msk [vmem:[%s890 + $0x28] sm:$0x3] %vm894, %v875
        %899 = vst.msk [vmem:[%s890 + $0x30] sm:$0xff] %vm891, %v860
        %900 = vst.msk [vmem:[%s890 + $0x38] sm:$0xff] %vm891, %v770
        %901 = vst.msk [vmem:[%s890 + $0x40] sm:$0x3] %vm894, %v876
        %902 = vst.msk [vmem:[%s890 + $0x48] sm:$0xff] %vm891, %v861
        %903 = vst.msk [vmem:[%s890 + $0x50] sm:$0xff] %vm891, %v773
        %904 = vst.msk [vmem:[%s890 + $0x58] sm:$0x3] %vm894, %v877
        %905 = vst.msk [vmem:[%s890 + $0x60] sm:$0xff] %vm891, %v862
        %906 = vst.msk [vmem:[%s890 + $0x68] sm:$0xff] %vm891, %v776
        %907 = vst.msk [vmem:[%s890 + $0x70] sm:$0x3] %vm894, %v878
        %908 = vst.msk [vmem:[%s890 + $0x78] sm:$0xff] %vm891, %v863
        %909 = vst.msk [vmem:[%s890 + $0x80] sm:$0xff] %vm891, %v779
        %910 = vst.msk [vmem:[%s890 + $0x88] sm:$0x3] %vm894, %v879
        %911 = vst.msk [vmem:[%s890 + $0x90] sm:$0xff] %vm891, %v864
        %912 = vst.msk [vmem:[%s890 + $0x98] sm:$0xff] %vm891, %v782
        %913 = vst.msk [vmem:[%s890 + $0xa0] sm:$0x3] %vm894, %v880
        %914 = vst.msk [vmem:[%s890 + $0xa8] sm:$0xff] %vm891, %v865
        %915 = vst.msk [vmem:[%s890 + $0xb0] sm:$0xff] %vm891, %v785
        %916 = vst.msk [vmem:[%s890 + $0xb8] sm:$0x3] %vm894, %v881
        %917 = vst.msk [vmem:[%s890 + $0xc0] sm:$0xff] %vm891, %v866
        %918 = vst.msk [vmem:[%s890 + $0xc8] sm:$0xff] %vm891, %v788
        %919 = vst.msk [vmem:[%s890 + $0xd0] sm:$0x3] %vm894, %v882
        %920 = vst.msk [vmem:[%s890 + $0xd8] sm:$0xff] %vm891, %v867
        %921 = vst.msk [vmem:[%s890 + $0xe0] sm:$0xff] %vm891, %v791
        %922 = vst.msk [vmem:[%s890 + $0xe8] sm:$0x3] %vm894, %v883
        %923 = vst.msk [vmem:[%s890 + $0xf0] sm:$0xff] %vm891, %v868
        %924 = vst.msk [vmem:[%s890 + $0xf8] sm:$0xff] %vm891, %v794
        %925 = vst.msk [vmem:[%s890 + $0x100] sm:$0x3] %vm894, %v884
        %926 = vst.msk [vmem:[%s890 + $0x108] sm:$0xff] %vm891, %v869
        %927 = vst.msk [vmem:[%s890 + $0x110] sm:$0xff] %vm891, %v797
        %928 = vst.msk [vmem:[%s890 + $0x118] sm:$0x3] %vm894, %v885
        %929 = vst.msk [vmem:[%s890 + $0x120] sm:$0xff] %vm891, %v870
        %930 = vst.msk [vmem:[%s890 + $0x128] sm:$0xff] %vm891, %v800
        %931 = vst.msk [vmem:[%s890 + $0x130] sm:$0x3] %vm894, %v886
        %932 = vst.msk [vmem:[%s890 + $0x138] sm:$0xff] %vm891, %v871
        %933 = vst.msk [vmem:[%s890 + $0x140] sm:$0xff] %vm891, %v803
        %934 = vst.msk [vmem:[%s890 + $0x148] sm:$0x3] %vm894, %v887
        %935 = vst.msk [vmem:[%s890 + $0x150] sm:$0xff] %vm891, %v872
        %936 = vst.msk [vmem:[%s890 + $0x158] sm:$0xff] %vm891, %v806
        %937 = vst.msk [vmem:[%s890 + $0x160] sm:$0x3] %vm894, %v888
        %938 = vst.msk [vmem:[%s890 + $0x168] sm:$0xff] %vm891, %v873
        %939 = vst.msk [vmem:[%s890 + $0x170] sm:$0xff] %vm891, %v809
        %940 = vst.msk [vmem:[%s890 + $0x178] sm:$0x3] %vm894, %v889
        %941 = vst.msk [vmem:[#allocation2] sm:$0xff] %vm891, 0.0
        %942 = vst.msk [vmem:[#allocation2 + $0x8] sm:$0xff] %vm891, 0.0
        %943 = vst.msk [vmem:[#allocation2 + $0x10] sm:$0x3] %vm894, 0.0
        %s944 = scalar_lea.vmem [#allocation2], 408
        %945 = vst.msk [vmem:[%s944] sm:$0xff] %vm891, 0.0
        %946 = vst.msk [vmem:[%s944 + $0x8] sm:$0xff] %vm891, 0.0
        %947 = vst.msk [vmem:[%s944 + $0x10] sm:$0x3] %vm894, 0.0
      $region44: #{tpu_custom_call.1} parent=39 // pred_fallthru
        _
      %v948 = vld [vmem:[%s309] sm:$0x7]
      %v949 = vld [vmem:[%s309 + $0x4] sm:$0x7]
      %v950 = vld [vmem:[%s309 + $0x8] sm:$0x7]
      %s951 = smul.u32 %s23, 8
      %v952 = vld [vmem:[%s312] sm:$0x1]
      %v954 = vlaneseq
      %v955 = vshrl.u32 %v954, 7
      %v956 = vsub.s32 0, %v955
      %v957 = vrot.slane %v952, %v956
      %s959 = smul.u32 %s951, 24
      %s960 = scalar_lea.vmem [#allocation2], %s959
      %v961 = vld [vmem:[%s960] sm:$0xff]
      %v962 = vld [vmem:[%s960 + $0x8] sm:$0xff]
      %v963 = vld [vmem:[%s960 + $0x18] sm:$0xff]
      %v964 = vld [vmem:[%s960 + $0x20] sm:$0xff]
      %v965 = vld [vmem:[%s960 + $0x30] sm:$0xff]
      %v966 = vld [vmem:[%s960 + $0x38] sm:$0xff]
      %v967 = vld [vmem:[%s960 + $0x48] sm:$0xff]
      %v968 = vld [vmem:[%s960 + $0x50] sm:$0xff]
      %v969 = vld [vmem:[%s960 + $0x60] sm:$0xff]
      %v970 = vld [vmem:[%s960 + $0x68] sm:$0xff]
      %v971 = vld [vmem:[%s960 + $0x78] sm:$0xff]
      %v972 = vld [vmem:[%s960 + $0x80] sm:$0xff]
      %v973 = vld [vmem:[%s960 + $0x90] sm:$0xff]
      %v974 = vld [vmem:[%s960 + $0x98] sm:$0xff]
      %v975 = vld [vmem:[%s960 + $0xa8] sm:$0xff]
      %v976 = vld [vmem:[%s960 + $0xb0] sm:$0xff]
      %v977 = vlaneseq
      %v978 = vshrl.u32 %v977, 7
      %v979 = vsub.s32 0, %v978
      %v980 = vrot.slane %v948, %v979
      %v981 = vmul.f32 %v961, %v980
      %v982 = vmul.f32 %v962, %v980
      %v983 = vmul.f32 %v963, %v980
      %v984 = vmul.f32 %v964, %v980
      %v985 = vmul.f32 %v965, %v980
      %v986 = vmul.f32 %v966, %v980
      %v987 = vmul.f32 %v967, %v980
      %v988 = vmul.f32 %v968, %v980
      %v989 = vmul.f32 %v969, %v980
      %v990 = vmul.f32 %v970, %v980
      %v991 = vmul.f32 %v971, %v980
      %v992 = vmul.f32 %v972, %v980
      %v993 = vmul.f32 %v973, %v980
      %v994 = vmul.f32 %v974, %v980
      %v995 = vmul.f32 %v975, %v980
      %v996 = vmul.f32 %v976, %v980
      %v997 = vadd.f32 %v957, %v981
      %v998 = vadd.f32 %v957, %v982
      %v999 = vadd.f32 %v957, %v983
      %v1000 = vadd.f32 %v957, %v984
      %v1001 = vadd.f32 %v957, %v985
      %v1002 = vadd.f32 %v957, %v986
      %v1003 = vadd.f32 %v957, %v987
      %v1004 = vadd.f32 %v957, %v988
      %v1005 = vadd.f32 %v957, %v989
      %v1006 = vadd.f32 %v957, %v990
      %v1007 = vadd.f32 %v957, %v991
      %v1008 = vadd.f32 %v957, %v992
      %v1009 = vadd.f32 %v957, %v993
      %v1010 = vadd.f32 %v957, %v994
      %v1011 = vadd.f32 %v957, %v995
      %v1012 = vadd.f32 %v957, %v996
      %v1013 = vld [vmem:[%s960 + $0x1] sm:$0xff]
      %v1014 = vld [vmem:[%s960 + $0x9] sm:$0xff]
      %v1015 = vld [vmem:[%s960 + $0x19] sm:$0xff]
      %v1016 = vld [vmem:[%s960 + $0x21] sm:$0xff]
      %v1017 = vld [vmem:[%s960 + $0x31] sm:$0xff]
      %v1018 = vld [vmem:[%s960 + $0x39] sm:$0xff]
      %v1019 = vld [vmem:[%s960 + $0x49] sm:$0xff]
      %v1020 = vld [vmem:[%s960 + $0x51] sm:$0xff]
      %v1021 = vld [vmem:[%s960 + $0x61] sm:$0xff]
      %v1022 = vld [vmem:[%s960 + $0x69] sm:$0xff]
      %v1023 = vld [vmem:[%s960 + $0x79] sm:$0xff]
      %v1024 = vld [vmem:[%s960 + $0x81] sm:$0xff]
      %v1025 = vld [vmem:[%s960 + $0x91] sm:$0xff]
      %v1026 = vld [vmem:[%s960 + $0x99] sm:$0xff]
      %v1027 = vld [vmem:[%s960 + $0xa9] sm:$0xff]
      %v1028 = vld [vmem:[%s960 + $0xb1] sm:$0xff]
      %v1029 = vlaneseq
      %v1030 = vshrl.u32 %v1029, 7
      %v1031 = vsub.s32 1, %v1030
      %v1032 = vrot.slane %v948, %v1031
      %v1033 = vmul.f32 %v1013, %v1032
      %v1034 = vmul.f32 %v1014, %v1032
      %v1035 = vmul.f32 %v1015, %v1032
      %v1036 = vmul.f32 %v1016, %v1032
      %v1037 = vmul.f32 %v1017, %v1032
      %v1038 = vmul.f32 %v1018, %v1032
      %v1039 = vmul.f32 %v1019, %v1032
      %v1040 = vmul.f32 %v1020, %v1032
      %v1041 = vmul.f32 %v1021, %v1032
      %v1042 = vmul.f32 %v1022, %v1032
      %v1043 = vmul.f32 %v1023, %v1032
      %v1044 = vmul.f32 %v1024, %v1032
      %v1045 = vmul.f32 %v1025, %v1032
      %v1046 = vmul.f32 %v1026, %v1032
      %v1047 = vmul.f32 %v1027, %v1032
      %v1048 = vmul.f32 %v1028, %v1032
      %v1049 = vadd.f32 %v997, %v1033
      %v1050 = vadd.f32 %v998, %v1034
      %v1051 = vadd.f32 %v999, %v1035
      %v1052 = vadd.f32 %v1000, %v1036
      %v1053 = vadd.f32 %v1001, %v1037
      %v1054 = vadd.f32 %v1002, %v1038
      %v1055 = vadd.f32 %v1003, %v1039
      %v1056 = vadd.f32 %v1004, %v1040
      %v1057 = vadd.f32 %v1005, %v1041
      %v1058 = vadd.f32 %v1006, %v1042
      %v1059 = vadd.f32 %v1007, %v1043
      %v1060 = vadd.f32 %v1008, %v1044
      %v1061 = vadd.f32 %v1009, %v1045
      %v1062 = vadd.f32 %v1010, %v1046
      %v1063 = vadd.f32 %v1011, %v1047
      %v1064 = vadd.f32 %v1012, %v1048
      %v1065 = vld [vmem:[%s960 + $0x2] sm:$0xff]
      %v1066 = vld [vmem:[%s960 + $0xa] sm:$0xff]
      %v1067 = vld [vmem:[%s960 + $0x1a] sm:$0xff]
      %v1068 = vld [vmem:[%s960 + $0x22] sm:$0xff]
      %v1069 = vld [vmem:[%s960 + $0x32] sm:$0xff]
      %v1070 = vld [vmem:[%s960 + $0x3a] sm:$0xff]
      %v1071 = vld [vmem:[%s960 + $0x4a] sm:$0xff]
      %v1072 = vld [vmem:[%s960 + $0x52] sm:$0xff]
      %v1073 = vld [vmem:[%s960 + $0x62] sm:$0xff]
      %v1074 = vld [vmem:[%s960 + $0x6a] sm:$0xff]
      %v1075 = vld [vmem:[%s960 + $0x7a] sm:$0xff]
      %v1076 = vld [vmem:[%s960 + $0x82] sm:$0xff]
      %v1077 = vld [vmem:[%s960 + $0x92] sm:$0xff]
      %v1078 = vld [vmem:[%s960 + $0x9a] sm:$0xff]
      %v1079 = vld [vmem:[%s960 + $0xaa] sm:$0xff]
      %v1080 = vld [vmem:[%s960 + $0xb2] sm:$0xff]
      %v1081 = vlaneseq
      %v1082 = vshrl.u32 %v1081, 7
      %v1083 = vsub.s32 2, %v1082
      %v1084 = vrot.slane %v948, %v1083
      %v1085 = vmul.f32 %v1065, %v1084
      %v1086 = vmul.f32 %v1066, %v1084
      %v1087 = vmul.f32 %v1067, %v1084
      %v1088 = vmul.f32 %v1068, %v1084
      %v1089 = vmul.f32 %v1069, %v1084
      %v1090 = vmul.f32 %v1070, %v1084
      %v1091 = vmul.f32 %v1071, %v1084
      %v1092 = vmul.f32 %v1072, %v1084
      %v1093 = vmul.f32 %v1073, %v1084
      %v1094 = vmul.f32 %v1074, %v1084
      %v1095 = vmul.f32 %v1075, %v1084
      %v1096 = vmul.f32 %v1076, %v1084
      %v1097 = vmul.f32 %v1077, %v1084
      %v1098 = vmul.f32 %v1078, %v1084
      %v1099 = vmul.f32 %v1079, %v1084
      %v1100 = vmul.f32 %v1080, %v1084
      %v1101 = vadd.f32 %v1049, %v1085
      %v1102 = vadd.f32 %v1050, %v1086
      %v1103 = vadd.f32 %v1051, %v1087
      %v1104 = vadd.f32 %v1052, %v1088
      %v1105 = vadd.f32 %v1053, %v1089
      %v1106 = vadd.f32 %v1054, %v1090
      %v1107 = vadd.f32 %v1055, %v1091
      %v1108 = vadd.f32 %v1056, %v1092
      %v1109 = vadd.f32 %v1057, %v1093
      %v1110 = vadd.f32 %v1058, %v1094
      %v1111 = vadd.f32 %v1059, %v1095
      %v1112 = vadd.f32 %v1060, %v1096
      %v1113 = vadd.f32 %v1061, %v1097
      %v1114 = vadd.f32 %v1062, %v1098
      %v1115 = vadd.f32 %v1063, %v1099
      %v1116 = vadd.f32 %v1064, %v1100
      %s1117 = sadd.s32 %s951, 1
      %s1118 = smul.u32 %s1117, 24
      %s1119 = scalar_lea.vmem [#allocation2], %s1118
      %v1120 = vld [vmem:[%s1119] sm:$0xff]
      %v1121 = vld [vmem:[%s1119 + $0x8] sm:$0xff]
      %v1122 = vld [vmem:[%s1119 + $0x18] sm:$0xff]
      %v1123 = vld [vmem:[%s1119 + $0x20] sm:$0xff]
      %v1124 = vld [vmem:[%s1119 + $0x30] sm:$0xff]
      %v1125 = vld [vmem:[%s1119 + $0x38] sm:$0xff]
      %v1126 = vld [vmem:[%s1119 + $0x48] sm:$0xff]
      %v1127 = vld [vmem:[%s1119 + $0x50] sm:$0xff]
      %v1128 = vld [vmem:[%s1119 + $0x60] sm:$0xff]
      %v1129 = vld [vmem:[%s1119 + $0x68] sm:$0xff]
      %v1130 = vld [vmem:[%s1119 + $0x78] sm:$0xff]
      %v1131 = vld [vmem:[%s1119 + $0x80] sm:$0xff]
      %v1132 = vld [vmem:[%s1119 + $0x90] sm:$0xff]
      %v1133 = vld [vmem:[%s1119 + $0x98] sm:$0xff]
      %v1134 = vld [vmem:[%s1119 + $0xa8] sm:$0xff]
      %v1135 = vld [vmem:[%s1119 + $0xb0] sm:$0xff]
      %v1136 = vlaneseq
      %v1137 = vshrl.u32 %v1136, 7
      %v1138 = vsub.s32 0, %v1137
      %v1139 = vrot.slane %v949, %v1138
      %v1140 = vmul.f32 %v1120, %v1139
      %v1141 = vmul.f32 %v1121, %v1139
      %v1142 = vmul.f32 %v1122, %v1139
      %v1143 = vmul.f32 %v1123, %v1139
      %v1144 = vmul.f32 %v1124, %v1139
      %v1145 = vmul.f32 %v1125, %v1139
      %v1146 = vmul.f32 %v1126, %v1139
      %v1147 = vmul.f32 %v1127, %v1139
      %v1148 = vmul.f32 %v1128, %v1139
      %v1149 = vmul.f32 %v1129, %v1139
      %v1150 = vmul.f32 %v1130, %v1139
      %v1151 = vmul.f32 %v1131, %v1139
      %v1152 = vmul.f32 %v1132, %v1139
      %v1153 = vmul.f32 %v1133, %v1139
      %v1154 = vmul.f32 %v1134, %v1139
      %v1155 = vmul.f32 %v1135, %v1139
      %v1156 = vadd.f32 %v1101, %v1140
      %v1157 = vadd.f32 %v1102, %v1141
      %v1158 = vadd.f32 %v1103, %v1142
      %v1159 = vadd.f32 %v1104, %v1143
      %v1160 = vadd.f32 %v1105, %v1144
      %v1161 = vadd.f32 %v1106, %v1145
      %v1162 = vadd.f32 %v1107, %v1146
      %v1163 = vadd.f32 %v1108, %v1147
      %v1164 = vadd.f32 %v1109, %v1148
      %v1165 = vadd.f32 %v1110, %v1149
      %v1166 = vadd.f32 %v1111, %v1150
      %v1167 = vadd.f32 %v1112, %v1151
      %v1168 = vadd.f32 %v1113, %v1152
      %v1169 = vadd.f32 %v1114, %v1153
      %v1170 = vadd.f32 %v1115, %v1154
      %v1171 = vadd.f32 %v1116, %v1155
      %v1172 = vld [vmem:[%s1119 + $0x1] sm:$0xff]
      %v1173 = vld [vmem:[%s1119 + $0x9] sm:$0xff]
      %v1174 = vld [vmem:[%s1119 + $0x19] sm:$0xff]
      %v1175 = vld [vmem:[%s1119 + $0x21] sm:$0xff]
      %v1176 = vld [vmem:[%s1119 + $0x31] sm:$0xff]
      %v1177 = vld [vmem:[%s1119 + $0x39] sm:$0xff]
      %v1178 = vld [vmem:[%s1119 + $0x49] sm:$0xff]
      %v1179 = vld [vmem:[%s1119 + $0x51] sm:$0xff]
      %v1180 = vld [vmem:[%s1119 + $0x61] sm:$0xff]
      %v1181 = vld [vmem:[%s1119 + $0x69] sm:$0xff]
      %v1182 = vld [vmem:[%s1119 + $0x79] sm:$0xff]
      %v1183 = vld [vmem:[%s1119 + $0x81] sm:$0xff]
      %v1184 = vld [vmem:[%s1119 + $0x91] sm:$0xff]
      %v1185 = vld [vmem:[%s1119 + $0x99] sm:$0xff]
      %v1186 = vld [vmem:[%s1119 + $0xa9] sm:$0xff]
      %v1187 = vld [vmem:[%s1119 + $0xb1] sm:$0xff]
      %v1188 = vlaneseq
      %v1189 = vshrl.u32 %v1188, 7
      %v1190 = vsub.s32 1, %v1189
      %v1191 = vrot.slane %v949, %v1190
      %v1192 = vmul.f32 %v1172, %v1191
      %v1193 = vmul.f32 %v1173, %v1191
      %v1194 = vmul.f32 %v1174, %v1191
      %v1195 = vmul.f32 %v1175, %v1191
      %v1196 = vmul.f32 %v1176, %v1191
      %v1197 = vmul.f32 %v1177, %v1191
      %v1198 = vmul.f32 %v1178, %v1191
      %v1199 = vmul.f32 %v1179, %v1191
      %v1200 = vmul.f32 %v1180, %v1191
      %v1201 = vmul.f32 %v1181, %v1191
      %v1202 = vmul.f32 %v1182, %v1191
      %v1203 = vmul.f32 %v1183, %v1191
      %v1204 = vmul.f32 %v1184, %v1191
      %v1205 = vmul.f32 %v1185, %v1191
      %v1206 = vmul.f32 %v1186, %v1191
      %v1207 = vmul.f32 %v1187, %v1191
      %v1208 = vadd.f32 %v1156, %v1192
      %v1209 = vadd.f32 %v1157, %v1193
      %v1210 = vadd.f32 %v1158, %v1194
      %v1211 = vadd.f32 %v1159, %v1195
      %v1212 = vadd.f32 %v1160, %v1196
      %v1213 = vadd.f32 %v1161, %v1197
      %v1214 = vadd.f32 %v1162, %v1198
      %v1215 = vadd.f32 %v1163, %v1199
      %v1216 = vadd.f32 %v1164, %v1200
      %v1217 = vadd.f32 %v1165, %v1201
      %v1218 = vadd.f32 %v1166, %v1202
      %v1219 = vadd.f32 %v1167, %v1203
      %v1220 = vadd.f32 %v1168, %v1204
      %v1221 = vadd.f32 %v1169, %v1205
      %v1222 = vadd.f32 %v1170, %v1206
      %v1223 = vadd.f32 %v1171, %v1207
      %v1224 = vld [vmem:[%s1119 + $0x2] sm:$0xff]
      %v1225 = vld [vmem:[%s1119 + $0xa] sm:$0xff]
      %v1226 = vld [vmem:[%s1119 + $0x1a] sm:$0xff]
      %v1227 = vld [vmem:[%s1119 + $0x22] sm:$0xff]
      %v1228 = vld [vmem:[%s1119 + $0x32] sm:$0xff]
      %v1229 = vld [vmem:[%s1119 + $0x3a] sm:$0xff]
      %v1230 = vld [vmem:[%s1119 + $0x4a] sm:$0xff]
      %v1231 = vld [vmem:[%s1119 + $0x52] sm:$0xff]
      %v1232 = vld [vmem:[%s1119 + $0x62] sm:$0xff]
      %v1233 = vld [vmem:[%s1119 + $0x6a] sm:$0xff]
      %v1234 = vld [vmem:[%s1119 + $0x7a] sm:$0xff]
      %v1235 = vld [vmem:[%s1119 + $0x82] sm:$0xff]
      %v1236 = vld [vmem:[%s1119 + $0x92] sm:$0xff]
      %v1237 = vld [vmem:[%s1119 + $0x9a] sm:$0xff]
      %v1238 = vld [vmem:[%s1119 + $0xaa] sm:$0xff]
      %v1239 = vld [vmem:[%s1119 + $0xb2] sm:$0xff]
      %v1240 = vlaneseq
      %v1241 = vshrl.u32 %v1240, 7
      %v1242 = vsub.s32 2, %v1241
      %v1243 = vrot.slane %v949, %v1242
      %v1244 = vmul.f32 %v1224, %v1243
      %v1245 = vmul.f32 %v1225, %v1243
      %v1246 = vmul.f32 %v1226, %v1243
      %v1247 = vmul.f32 %v1227, %v1243
      %v1248 = vmul.f32 %v1228, %v1243
      %v1249 = vmul.f32 %v1229, %v1243
      %v1250 = vmul.f32 %v1230, %v1243
      %v1251 = vmul.f32 %v1231, %v1243
      %v1252 = vmul.f32 %v1232, %v1243
      %v1253 = vmul.f32 %v1233, %v1243
      %v1254 = vmul.f32 %v1234, %v1243
      %v1255 = vmul.f32 %v1235, %v1243
      %v1256 = vmul.f32 %v1236, %v1243
      %v1257 = vmul.f32 %v1237, %v1243
      %v1258 = vmul.f32 %v1238, %v1243
      %v1259 = vmul.f32 %v1239, %v1243
      %v1260 = vadd.f32 %v1208, %v1244
      %v1261 = vadd.f32 %v1209, %v1245
      %v1262 = vadd.f32 %v1210, %v1246
      %v1263 = vadd.f32 %v1211, %v1247
      %v1264 = vadd.f32 %v1212, %v1248
      %v1265 = vadd.f32 %v1213, %v1249
      %v1266 = vadd.f32 %v1214, %v1250
      %v1267 = vadd.f32 %v1215, %v1251
      %v1268 = vadd.f32 %v1216, %v1252
      %v1269 = vadd.f32 %v1217, %v1253
      %v1270 = vadd.f32 %v1218, %v1254
      %v1271 = vadd.f32 %v1219, %v1255
      %v1272 = vadd.f32 %v1220, %v1256
      %v1273 = vadd.f32 %v1221, %v1257
      %v1274 = vadd.f32 %v1222, %v1258
      %v1275 = vadd.f32 %v1223, %v1259
      %s1276 = sadd.s32 %s951, 2
      %s1277 = smul.u32 %s1276, 24
      %s1278 = scalar_lea.vmem [#allocation2], %s1277
      %v1279 = vld [vmem:[%s1278] sm:$0xff]
      %v1280 = vld [vmem:[%s1278 + $0x8] sm:$0xff]
      %v1281 = vld [vmem:[%s1278 + $0x18] sm:$0xff]
      %v1282 = vld [vmem:[%s1278 + $0x20] sm:$0xff]
      %v1283 = vld [vmem:[%s1278 + $0x30] sm:$0xff]
      %v1284 = vld [vmem:[%s1278 + $0x38] sm:$0xff]
      %v1285 = vld [vmem:[%s1278 + $0x48] sm:$0xff]
      %v1286 = vld [vmem:[%s1278 + $0x50] sm:$0xff]
      %v1287 = vld [vmem:[%s1278 + $0x60] sm:$0xff]
      %v1288 = vld [vmem:[%s1278 + $0x68] sm:$0xff]
      %v1289 = vld [vmem:[%s1278 + $0x78] sm:$0xff]
      %v1290 = vld [vmem:[%s1278 + $0x80] sm:$0xff]
      %v1291 = vld [vmem:[%s1278 + $0x90] sm:$0xff]
      %v1292 = vld [vmem:[%s1278 + $0x98] sm:$0xff]
      %v1293 = vld [vmem:[%s1278 + $0xa8] sm:$0xff]
      %v1294 = vld [vmem:[%s1278 + $0xb0] sm:$0xff]
      %v1295 = vlaneseq
      %v1296 = vshrl.u32 %v1295, 7
      %v1297 = vsub.s32 0, %v1296
      %v1298 = vrot.slane %v950, %v1297
      %v1299 = vmul.f32 %v1279, %v1298
      %v1300 = vmul.f32 %v1280, %v1298
      %v1301 = vmul.f32 %v1281, %v1298
      %v1302 = vmul.f32 %v1282, %v1298
      %v1303 = vmul.f32 %v1283, %v1298
      %v1304 = vmul.f32 %v1284, %v1298
      %v1305 = vmul.f32 %v1285, %v1298
      %v1306 = vmul.f32 %v1286, %v1298
      %v1307 = vmul.f32 %v1287, %v1298
      %v1308 = vmul.f32 %v1288, %v1298
      %v1309 = vmul.f32 %v1289, %v1298
      %v1310 = vmul.f32 %v1290, %v1298
      %v1311 = vmul.f32 %v1291, %v1298
      %v1312 = vmul.f32 %v1292, %v1298
      %v1313 = vmul.f32 %v1293, %v1298
      %v1314 = vmul.f32 %v1294, %v1298
      %v1315 = vadd.f32 %v1260, %v1299
      %v1316 = vadd.f32 %v1261, %v1300
      %v1317 = vadd.f32 %v1262, %v1301
      %v1318 = vadd.f32 %v1263, %v1302
      %v1319 = vadd.f32 %v1264, %v1303
      %v1320 = vadd.f32 %v1265, %v1304
      %v1321 = vadd.f32 %v1266, %v1305
      %v1322 = vadd.f32 %v1267, %v1306
      %v1323 = vadd.f32 %v1268, %v1307
      %v1324 = vadd.f32 %v1269, %v1308
      %v1325 = vadd.f32 %v1270, %v1309
      %v1326 = vadd.f32 %v1271, %v1310
      %v1327 = vadd.f32 %v1272, %v1311
      %v1328 = vadd.f32 %v1273, %v1312
      %v1329 = vadd.f32 %v1274, %v1313
      %v1330 = vadd.f32 %v1275, %v1314
      %v1331 = vld [vmem:[%s1278 + $0x1] sm:$0xff]
      %v1332 = vld [vmem:[%s1278 + $0x9] sm:$0xff]
      %v1333 = vld [vmem:[%s1278 + $0x19] sm:$0xff]
      %v1334 = vld [vmem:[%s1278 + $0x21] sm:$0xff]
      %v1335 = vld [vmem:[%s1278 + $0x31] sm:$0xff]
      %v1336 = vld [vmem:[%s1278 + $0x39] sm:$0xff]
      %v1337 = vld [vmem:[%s1278 + $0x49] sm:$0xff]
      %v1338 = vld [vmem:[%s1278 + $0x51] sm:$0xff]
      %v1339 = vld [vmem:[%s1278 + $0x61] sm:$0xff]
      %v1340 = vld [vmem:[%s1278 + $0x69] sm:$0xff]
      %v1341 = vld [vmem:[%s1278 + $0x79] sm:$0xff]
      %v1342 = vld [vmem:[%s1278 + $0x81] sm:$0xff]
      %v1343 = vld [vmem:[%s1278 + $0x91] sm:$0xff]
      %v1344 = vld [vmem:[%s1278 + $0x99] sm:$0xff]
      %v1345 = vld [vmem:[%s1278 + $0xa9] sm:$0xff]
      %v1346 = vld [vmem:[%s1278 + $0xb1] sm:$0xff]
      %v1347 = vlaneseq
      %v1348 = vshrl.u32 %v1347, 7
      %v1349 = vsub.s32 1, %v1348
      %v1350 = vrot.slane %v950, %v1349
      %v1351 = vmul.f32 %v1331, %v1350
      %v1352 = vmul.f32 %v1332, %v1350
      %v1353 = vmul.f32 %v1333, %v1350
      %v1354 = vmul.f32 %v1334, %v1350
      %v1355 = vmul.f32 %v1335, %v1350
      %v1356 = vmul.f32 %v1336, %v1350
      %v1357 = vmul.f32 %v1337, %v1350
      %v1358 = vmul.f32 %v1338, %v1350
      %v1359 = vmul.f32 %v1339, %v1350
      %v1360 = vmul.f32 %v1340, %v1350
      %v1361 = vmul.f32 %v1341, %v1350
      %v1362 = vmul.f32 %v1342, %v1350
      %v1363 = vmul.f32 %v1343, %v1350
      %v1364 = vmul.f32 %v1344, %v1350
      %v1365 = vmul.f32 %v1345, %v1350
      %v1366 = vmul.f32 %v1346, %v1350
      %v1367 = vadd.f32 %v1315, %v1351
      %v1368 = vadd.f32 %v1316, %v1352
      %v1369 = vadd.f32 %v1317, %v1353
      %v1370 = vadd.f32 %v1318, %v1354
      %v1371 = vadd.f32 %v1319, %v1355
      %v1372 = vadd.f32 %v1320, %v1356
      %v1373 = vadd.f32 %v1321, %v1357
      %v1374 = vadd.f32 %v1322, %v1358
      %v1375 = vadd.f32 %v1323, %v1359
      %v1376 = vadd.f32 %v1324, %v1360
      %v1377 = vadd.f32 %v1325, %v1361
      %v1378 = vadd.f32 %v1326, %v1362
      %v1379 = vadd.f32 %v1327, %v1363
      %v1380 = vadd.f32 %v1328, %v1364
      %v1381 = vadd.f32 %v1329, %v1365
      %v1382 = vadd.f32 %v1330, %v1366
      %v1383 = vld [vmem:[%s1278 + $0x2] sm:$0xff]
      %v1384 = vld [vmem:[%s1278 + $0xa] sm:$0xff]
      %v1385 = vld [vmem:[%s1278 + $0x1a] sm:$0xff]
      %v1386 = vld [vmem:[%s1278 + $0x22] sm:$0xff]
      %v1387 = vld [vmem:[%s1278 + $0x32] sm:$0xff]
      %v1388 = vld [vmem:[%s1278 + $0x3a] sm:$0xff]
      %v1389 = vld [vmem:[%s1278 + $0x4a] sm:$0xff]
      %v1390 = vld [vmem:[%s1278 + $0x52] sm:$0xff]
      %v1391 = vld [vmem:[%s1278 + $0x62] sm:$0xff]
      %v1392 = vld [vmem:[%s1278 + $0x6a] sm:$0xff]
      %v1393 = vld [vmem:[%s1278 + $0x7a] sm:$0xff]
      %v1394 = vld [vmem:[%s1278 + $0x82] sm:$0xff]
      %v1395 = vld [vmem:[%s1278 + $0x92] sm:$0xff]
      %v1396 = vld [vmem:[%s1278 + $0x9a] sm:$0xff]
      %v1397 = vld [vmem:[%s1278 + $0xaa] sm:$0xff]
      %v1398 = vld [vmem:[%s1278 + $0xb2] sm:$0xff]
      %v1399 = vlaneseq
      %v1400 = vshrl.u32 %v1399, 7
      %v1401 = vsub.s32 2, %v1400
      %v1402 = vrot.slane %v950, %v1401
      %v1403 = vmul.f32 %v1383, %v1402
      %v1404 = vmul.f32 %v1384, %v1402
      %v1405 = vmul.f32 %v1385, %v1402
      %v1406 = vmul.f32 %v1386, %v1402
      %v1407 = vmul.f32 %v1387, %v1402
      %v1408 = vmul.f32 %v1388, %v1402
      %v1409 = vmul.f32 %v1389, %v1402
      %v1410 = vmul.f32 %v1390, %v1402
      %v1411 = vmul.f32 %v1391, %v1402
      %v1412 = vmul.f32 %v1392, %v1402
      %v1413 = vmul.f32 %v1393, %v1402
      %v1414 = vmul.f32 %v1394, %v1402
      %v1415 = vmul.f32 %v1395, %v1402
      %v1416 = vmul.f32 %v1396, %v1402
      %v1417 = vmul.f32 %v1397, %v1402
      %v1418 = vmul.f32 %v1398, %v1402
      %v1419 = vadd.f32 %v1367, %v1403
      %v1420 = vadd.f32 %v1368, %v1404
      %v1421 = vadd.f32 %v1369, %v1405
      %v1422 = vadd.f32 %v1370, %v1406
      %v1423 = vadd.f32 %v1371, %v1407
      %v1424 = vadd.f32 %v1372, %v1408
      %v1425 = vadd.f32 %v1373, %v1409
      %v1426 = vadd.f32 %v1374, %v1410
      %v1427 = vadd.f32 %v1375, %v1411
      %v1428 = vadd.f32 %v1376, %v1412
      %v1429 = vadd.f32 %v1377, %v1413
      %v1430 = vadd.f32 %v1378, %v1414
      %v1431 = vadd.f32 %v1379, %v1415
      %v1432 = vadd.f32 %v1380, %v1416
      %v1433 = vadd.f32 %v1381, %v1417
      %v1434 = vadd.f32 %v1382, %v1418
      %v1435 = vmax.f32 %v1419, 0.0
      %v1436 = vmax.f32 %v1420, 0.0
      %v1437 = vmax.f32 %v1421, 0.0
      %v1438 = vmax.f32 %v1422, 0.0
      %v1439 = vmax.f32 %v1423, 0.0
      %v1440 = vmax.f32 %v1424, 0.0
      %v1441 = vmax.f32 %v1425, 0.0
      %v1442 = vmax.f32 %v1426, 0.0
      %v1443 = vmax.f32 %v1427, 0.0
      %v1444 = vmax.f32 %v1428, 0.0
      %v1445 = vmax.f32 %v1429, 0.0
      %v1446 = vmax.f32 %v1430, 0.0
      %v1447 = vmax.f32 %v1431, 0.0
      %v1448 = vmax.f32 %v1432, 0.0
      %v1449 = vmax.f32 %v1433, 0.0
      %v1450 = vmax.f32 %v1434, 0.0
      %vm1451 = vcmask 64512
      %1452 = vst.msk [vmem:[%s325] sm:$0xff] %vm1451, %v1435
      %1453 = vst.msk [vmem:[%s325 + $0x8] sm:$0xff] %vm1451, %v1436
      %1454 = vst.msk [vmem:[%s325 + $0x10] sm:$0xff] %vm1451, %v1437
      %1455 = vst.msk [vmem:[%s325 + $0x18] sm:$0xff] %vm1451, %v1438
      %1456 = vst.msk [vmem:[%s325 + $0x20] sm:$0xff] %vm1451, %v1439
      %1457 = vst.msk [vmem:[%s325 + $0x28] sm:$0xff] %vm1451, %v1440
      %1458 = vst.msk [vmem:[%s325 + $0x30] sm:$0xff] %vm1451, %v1441
      %1459 = vst.msk [vmem:[%s325 + $0x38] sm:$0xff] %vm1451, %v1442
      %1460 = vst.msk [vmem:[%s325 + $0x40] sm:$0xff] %vm1451, %v1443
      %1461 = vst.msk [vmem:[%s325 + $0x48] sm:$0xff] %vm1451, %v1444
      %1462 = vst.msk [vmem:[%s325 + $0x50] sm:$0xff] %vm1451, %v1445
      %1463 = vst.msk [vmem:[%s325 + $0x58] sm:$0xff] %vm1451, %v1446
      %1464 = vst.msk [vmem:[%s325 + $0x60] sm:$0xff] %vm1451, %v1447
      %1465 = vst.msk [vmem:[%s325 + $0x68] sm:$0xff] %vm1451, %v1448
      %1466 = vst.msk [vmem:[%s325 + $0x70] sm:$0xff] %vm1451, %v1449
      %1467 = vst.msk [vmem:[%s325 + $0x78] sm:$0xff] %vm1451, %v1450
      %s1468 = smul.u32 8, %s23
      %p1469 = scmp.lt.s32.totalorder %s21, 1
      %s1470 = scalar_select %p1469, %s21, 1
      %p1471 = scmp.lt.s32.totalorder %s1468, 15
      %s1472 = scalar_select %p1471, %s1468, 15
      %p1473 = scmp.lt.s32.totalorder %s22, 0
      %s1474 = scalar_select %p1473, %s22, 0
      %s1475 = smul.addr %s1472, 2
      %s1476 = sadd.s32 %s1474, %s1475
      %s1477 = smul.addr %s1470, 32
      %s1478 = sadd.s32 %s1476, %s1477
      %s1479 = smul.addr %s1478, 8
      %s1480 = scalar_lea.vmem %s5, %s1479
      // Predicated region
      $region45: #{tpu_custom_call.1} parent=39 // pred_check
        %p1481 = pneg %p187
      $region46: #{tpu_custom_call.1} parent=39 // pred_check_branch
        %1483 = sbr.rel (%p1481) target = $region48
      $region47: #{tpu_custom_call.1} parent=39 // pred_region
        %s1484 = smul.u32 8, %s23
      $region48: #{tpu_custom_call.1} parent=39 // pred_fallthru
        _
    $region40: #{tpu_custom_call.1} parent=5 // pred_fallthru
      _
    %p1485 = scmp.le.s32.totalorder 2, %s11
    // Predicated region
    $region49: #{tpu_custom_call.1} parent=5 // pred_check
      %p1486 = pneg %p1485
    $region50: #{tpu_custom_call.1} parent=5 // pred_check_branch
      %1488 = sbr.rel (%p1486) target = $region52
    $region51: #{tpu_custom_call.1} parent=5 // pred_region
      %s1489 = ssub.s32 %s11, 2
      // Predicated region
      $region53: #{tpu_custom_call.1} parent=51 // pred_check
        %p1490 = pneg %p193
      $region54: #{tpu_custom_call.1} parent=51 // pred_check_branch
        %1492 = sbr.rel (%p1490) target = $region56
      $region55: #{tpu_custom_call.1} parent=51 // pred_region
        %s1493 = smul.u32 8, %s26
        %p1494 = scmp.lt.s32.totalorder %s24, 1
        %s1495 = scalar_select %p1494, %s24, 1
        %p1496 = scmp.lt.s32.totalorder %s1493, 15
        %s1497 = scalar_select %p1496, %s1493, 15
        %p1498 = scmp.lt.s32.totalorder %s25, 0
        %s1499 = scalar_select %p1498, %s25, 0
        %s1500 = smul.addr %s1497, 2
        %s1501 = sadd.s32 %s1499, %s1500
        %s1502 = smul.addr %s1495, 32
        %s1503 = sadd.s32 %s1501, %s1502
        %s1504 = smul.addr %s1503, 8
        %s1505 = scalar_lea.vmem %s5, %s1504
      $region56: #{tpu_custom_call.1} parent=51 // pred_fallthru
        _
    $region52: #{tpu_custom_call.1} parent=5 // pred_fallthru
      _
  $region6: #{tpu_custom_call.1} parent=0 // loop_footer
    %s15 = sadd.s32 1, %s11
  $region7: #{tpu_custom_call.1} parent=0 // loop_footer_branch
    %10 = sbr.rel target = $region3
  $region8: #{tpu_custom_call.1} parent=0 // loop_exit
    _

</llo_original>
